<compile_context>
chip_gen: v7x
topology: tpu7x:2x2x1
jax: 0.10.0
libtpu: 0.0.40
codegen_flags: <defaults>
</compile_context>

<pallas_src>
import functools

import jax
import jax.numpy as jnp
from jax.experimental import pallas as pl
from jax.experimental.pallas import tpu as pltpu

BN_EPS = 1e-5
LANE = 128
SUBLANE = 8


def _round_up(x, m):
    return (x + m - 1) // m * m


# ------------------------------ Pallas kernel --------------------------------
def _fused_conv_bn_relu_kernel(
    p_ref,        # (tm, K_pad) bf16 patches tile (pipelined)
    w_hbm_ref,    # (K_pad, Cpad) bf16 weight, left in HBM (memory_space=ANY)
    gamma_ref,    # (1, Cpad) f32
    beta_ref,     # (1, Cpad) f32
    o_ref,        # (tm, Cpad) f32 output tile
    w_buf,        # (K_pad, Cpad) bf16 scratch: single-buffered resident weight
    sum_sc,       # (1, Cpad) f32 scratch: per-channel sum of conv
    sq_sc,        # (1, Cpad) f32 scratch: per-channel sum of conv^2
    scale_sc,     # (1, Cpad) f32 scratch: fused BN scale
    shift_sc,     # (1, Cpad) f32 scratch: fused BN shift
    *,
    inv_m,        # 1 / (N*OH*OW), static Python float
):
    p = pl.program_id(0)   # 0 = statistics pass, 1 = normalize/ReLU pass
    i = pl.program_id(1)   # M-tile index

    # Very first grid step: fetch the weight once into a single VMEM buffer
    # (no double-buffering of a resident operand) and zero the accumulators.
    @pl.when(jnp.logical_and(p == 0, i == 0))
    def _init():
        pltpu.sync_copy(w_hbm_ref, w_buf)
        sum_sc[...] = jnp.zeros_like(sum_sc)
        sq_sc[...] = jnp.zeros_like(sq_sc)

    # Conv for this M-tile: bf16 operands, f32 accumulation on the MXU.
    conv = jnp.dot(p_ref[...], w_buf[...], preferred_element_type=jnp.float32)

    @pl.when(p == 0)
    def _stats():
        # Padded M rows of `patches` are exact zeros -> their conv rows are 0
        # and contribute nothing to sum / sumsq, so no mask is needed.
        sum_sc[...] += jnp.sum(conv, axis=0, keepdims=True)
        sq_sc[...] += jnp.sum(conv * conv, axis=0, keepdims=True)

    # First step of pass 1: finalize training-mode BN stats in-kernel.
    @pl.when(jnp.logical_and(p == 1, i == 0))
    def _finalize():
        mean = sum_sc[...] * inv_m
        var = jnp.maximum(sq_sc[...] * inv_m - mean * mean, 0.0)  # biased var
        inv_std = jax.lax.rsqrt(var + BN_EPS)                     # EUP slot
        scale = gamma_ref[...] * inv_std     # padded channels: gamma=0 -> 0
        scale_sc[...] = scale
        shift_sc[...] = beta_ref[...] - mean * scale   # conv bias cancels

    @pl.when(p == 1)
    def _normalize():
        y = conv * scale_sc[...] + shift_sc[...]
        o_ref[...] = jnp.maximum(y, 0.0).astype(o_ref.dtype)


# ------------------------------ glue (JAX) -----------------------------------
def _im2col(x, kh, kw, stride, padding, dilation):
    """x: (N, C, H, W) -> patches (N*OH*OW, C*KH*KW), column order (C, KH, KW)."""
    n, c, h, w = x.shape
    xp = jnp.pad(x, ((0, 0), (0, 0), (padding, padding), (padding, padding)))
    oh = (h + 2 * padding - dilation * (kh - 1) - 1) // stride + 1
    ow = (w + 2 * padding - dilation * (kw - 1) - 1) // stride + 1
    cols = []
    for i in range(kh):
        for j in range(kw):
            di, dj = i * dilation, j * dilation
            cols.append(
                xp[:, :, di:di + stride * oh:stride, dj:dj + stride * ow:stride]
            )  # (N, C, OH, OW)
    col = jnp.stack(cols, axis=2)                  # (N, C, KH*KW, OH, OW)
    col = col.reshape(n, c * kh * kw, oh, ow)      # (C, KH, KW) column order
    col = col.transpose(0, 2, 3, 1).reshape(n * oh * ow, c * kh * kw)
    return col, oh, ow


def _vmem_bytes(tm, k_pad, cpad):
    """Per-step VMEM estimate: double-buffered patches + output tiles,
    single-buffered weight + tiny per-channel scratch."""
    return (2 * tm * k_pad * 2       # patches tile, bf16, 2 buffers
            + 2 * tm * cpad * 4      # output tile,  f32,  2 buffers
            + k_pad * cpad * 2       # resident weight, bf16, 1 buffer
            + 4 * cpad * 4)          # sum / sumsq / scale / shift scratch


def _pick_tm(m, k_pad, cpad, budget=40 << 20):
    """Largest M-tile under an explicit VMEM budget (also fits v7x's 64 MiB)."""
    m8 = _round_up(m, SUBLANE)
    if m8 <= 1024 and _vmem_bytes(m8, k_pad, cpad) <= budget:
        return m8                                   # whole problem in one tile
    for tm in (1024, 512, 256, 128, 64, 32, 16, 8):
        if tm <= m8 and _vmem_bytes(tm, k_pad, cpad) <= budget:
            return tm
    return 8


@functools.partial(jax.jit, static_argnames=("stride", "padding", "dilation"))
def conv2d_bn_relu(x, weight, bias, gamma, beta, *, stride=1, padding=0, dilation=1):
    """x: (N, Cin, H, W) NCHW; weight: (Cout, Cin, KH, KW).  Returns NCHW f32."""
    del bias  # Conv bias cancels exactly under training-mode BatchNorm.
    n, cin, h, w = x.shape
    cout, _, kh, kw = weight.shape

    # TODO(synk): fuse im2col into the kernel (manual DMA gather from an NHWC
    # input with memory_space=pl.ANY) to avoid this KH*KW x expansion in HBM.
    patches, oh, ow = _im2col(x.astype(jnp.float32), kh, kw, stride, padding, dilation)
    m, k = patches.shape

    k_pad = _round_up(k, SUBLANE)      # K padded only to the sublane quantum
    cpad = _round_up(cout, LANE)       # lane-dense output stores
    tm = _pick_tm(m, k_pad, cpad)
    m_pad = _round_up(m, tm)
    m_tiles = m_pad // tm

    # bf16 MXU operands (accumulation stays f32 inside the kernel).
    patches = jnp.pad(patches, ((0, m_pad - m), (0, k_pad - k))).astype(jnp.bfloat16)
    wmat = weight.reshape(cout, cin * kh * kw).T.astype(jnp.float32)   # (K, Cout)
    wmat = jnp.pad(wmat, ((0, k_pad - k), (0, cpad - cout))).astype(jnp.bfloat16)
    gamma_p = jnp.pad(gamma.astype(jnp.float32), (0, cpad - cout)).reshape(1, cpad)
    beta_p = jnp.pad(beta.astype(jnp.float32), (0, cpad - cout)).reshape(1, cpad)

    vmem_limit = int(min(max(4 * _vmem_bytes(tm, k_pad, cpad), 32 << 20), 48 << 20))

    out_flat = pl.pallas_call(
        functools.partial(_fused_conv_bn_relu_kernel, inv_m=1.0 / m),
        out_shape=jax.ShapeDtypeStruct((m_pad, cpad), jnp.float32),
        grid_spec=pltpu.PrefetchScalarGridSpec(
            num_scalar_prefetch=0,
            grid=(2, m_tiles),                                    # (pass, M-tile)
            in_specs=[
                pl.BlockSpec((tm, k_pad), lambda p, i: (i, 0)),   # patches tile
                pl.BlockSpec(memory_space=pl.ANY),                # weight (HBM)
                pl.BlockSpec((1, cpad), lambda p, i: (0, 0)),     # gamma
                pl.BlockSpec((1, cpad), lambda p, i: (0, 0)),     # beta
            ],
            # Pass 0 stays on block 0 (never written there) so no un-normalized
            # tile is copied to HBM; pass 1 writes each block exactly once.
            out_specs=pl.BlockSpec((tm, cpad), lambda p, i: (p * i, 0)),
            scratch_shapes=[
                pltpu.VMEM((k_pad, cpad), jnp.bfloat16),  # resident weight
                pltpu.VMEM((1, cpad), jnp.float32),       # sum
                pltpu.VMEM((1, cpad), jnp.float32),       # sumsq
                pltpu.VMEM((1, cpad), jnp.float32),       # fused BN scale
                pltpu.VMEM((1, cpad), jnp.float32),       # fused BN shift
            ],
        ),
        compiler_params=pltpu.CompilerParams(
            # Stats accumulate across M tiles and feed pass 1, so both axes are
            # sequential.  (v7x 2-TC sharding would need per-core partials.)
            dimension_semantics=("arbitrary", "arbitrary"),
            vmem_limit_bytes=vmem_limit,
        ),
    )(patches, wmat, gamma_p, beta_p)

    # (M_pad, Cpad) -> trim padding -> (N, OH, OW, Cout) -> NCHW
    return out_flat[:m, :cout].reshape(n, oh, ow, cout).transpose(0, 3, 1, 2)


# --------------------------- pure-JAX reference ------------------------------
def _reference(x, weight, bias, gamma, beta, *, stride, padding, dilation):
    conv = jax.lax.conv_general_dilated(
        x.astype(jnp.float32), weight.astype(jnp.float32),
        window_strides=(stride, stride),
        padding=[(padding, padding), (padding, padding)],
        rhs_dilation=(dilation, dilation),
        dimension_numbers=("NCHW", "OIHW", "NCHW"),
    ) + bias.reshape(1, -1, 1, 1)
    mean = conv.mean(axis=(0, 2, 3), keepdims=True)
    var = ((conv - mean) ** 2).mean(axis=(0, 2, 3), keepdims=True)
    y = (conv - mean) * jax.lax.rsqrt(var + BN_EPS)
    y = y * gamma.reshape(1, -1, 1, 1) + beta.reshape(1, -1, 1, 1)
    return jnp.maximum(y, 0.0)


# --------------------------------- main ---------------------------------------
if __name__ == "__main__":
    # Module config: Conv2d_Bn_Relu(in_channels=4, out_channels=8, kernel_size=3,
    #                               stride=1, padding=1, bias=True)
    N, CIN, H, W = 2, 4, 16, 16
    COUT, KH, KW = 8, 3, 3
    STRIDE, PAD, DIL = 1, 1, 1

    key = jax.random.PRNGKey(0)
    kx, kw_, kb = jax.random.split(key, 3)

    x = jax.random.normal(kx, (N, CIN, H, W), dtype=jnp.float32)
    # Deterministic param init (shapes per nn.Conv2d / nn.BatchNorm2d).
    fan_in = CIN * KH * KW
    bound = 1.0 / (fan_in ** 0.5)
    weight = jax.random.uniform(kw_, (COUT, CIN, KH, KW), jnp.float32, -bound, bound)
    bias = jax.random.uniform(kb, (COUT,), jnp.float32, -bound, bound)
    gamma = jnp.ones((COUT,), jnp.float32)   # BatchNorm2d weight init
    beta = jnp.zeros((COUT,), jnp.float32)   # BatchNorm2d bias init

    out = conv2d_bn_relu(x, weight, bias, gamma, beta,
                         stride=STRIDE, padding=PAD, dilation=DIL)
    out = jax.block_until_ready(out)

    ref = _reference(x, weight, bias, gamma, beta,
                     stride=STRIDE, padding=PAD, dilation=DIL)
    assert out.shape == (N, COUT, H, W), out.shape
    # bf16 MXU operands (f32 accumulation/output) -> tolerance relaxed vs f32.
    assert jnp.allclose(out, ref, atol=3e-2, rtol=3e-2), float(
        jnp.max(jnp.abs(out - ref)))

    print("KERNEL_OK")
</pallas_src>

<mosaic_0001>
module attributes {stable_mosaic.version = 11 : i64} {
  func.func @_fused_conv_bn_relu_kernel(%arg0: i32, %arg1: i32, %arg2: memref<512x40xbf16, #tpu.memory_space<vmem>>, %arg3: memref<40x128xbf16, #tpu.memory_space<any>>, %arg4: memref<1x128xf32, #tpu.memory_space<vmem>>, %arg5: memref<1x128xf32, #tpu.memory_space<vmem>>, %arg6: memref<512x128xf32, #tpu.memory_space<vmem>>, %arg7: memref<40x128xbf16, #tpu.memory_space<vmem>>, %arg8: memref<1x128xf32, #tpu.memory_space<vmem>>, %arg9: memref<1x128xf32, #tpu.memory_space<vmem>>, %arg10: memref<1x128xf32, #tpu.memory_space<vmem>>, %arg11: memref<1x128xf32, #tpu.memory_space<vmem>>) attributes {dimension_semantics = [#tpu.dimension_semantics<arbitrary>, #tpu.dimension_semantics<arbitrary>], iteration_bounds = array<i64: 2, 1>, scalar_prefetch = 0 : i64, scratch_operands = 5 : i64, tpu.core_type = #tpu.core_type<tc>, window_params = [{transform_indices = @transform_0, window_bounds = array<i64: 512, 40>}, {}, {pipeline_mode = #tpu.pipeline_mode<synchronous>, transform_indices = @transform_2, window_bounds = array<i64: 1, 128>}, {pipeline_mode = #tpu.pipeline_mode<synchronous>, transform_indices = @transform_3, window_bounds = array<i64: 1, 128>}, {transform_indices = @transform_4, window_bounds = array<i64: 512, 128>}]} {
    %c0_i32 = arith.constant 0 : i32
    %0 = arith.cmpi eq, %arg0, %c0_i32 : i32
    %c0_i32_0 = arith.constant 0 : i32
    %1 = arith.cmpi eq, %arg1, %c0_i32_0 : i32
    %2 = arith.andi %0, %1 : i1
    %3 = arith.extui %2 : i1 to i32
    %c0_i32_1 = arith.constant 0 : i32
    %4 = arith.cmpi ne, %3, %c0_i32_1 : i32
    scf.if %4 {
      "tpu.region"() ({
        %23 = tpu.sem_alloc : memref<!tpu.dma_semaphore, #tpu.memory_space<semaphore_mem>>
        tpu.enqueue_dma source(%arg3 : memref<40x128xbf16, #tpu.memory_space<any>>) target(%arg7 : memref<40x128xbf16, #tpu.memory_space<vmem>>) target_semaphore(%23 : memref<!tpu.dma_semaphore, #tpu.memory_space<semaphore_mem>>)
        tpu.wait_dma2 semaphore(%23 : memref<!tpu.dma_semaphore, #tpu.memory_space<semaphore_mem>>) src(%arg3 : memref<40x128xbf16, #tpu.memory_space<any>>) dst(%arg7 : memref<40x128xbf16, #tpu.memory_space<vmem>>)
        tpu.yield
      }) : () -> ()
      %cst_11 = arith.constant 0.000000e+00 : f32
      %19 = vector.broadcast %cst_11 : f32 to vector<1x128xf32>
      %c0_12 = arith.constant 0 : index
      %c0_13 = arith.constant 0 : index
      %20 = vector.load %arg8[%c0_12, %c0_13] : memref<1x128xf32, #tpu.memory_space<vmem>>, vector<1x128xf32>
      tpu.vector_store %arg8[%c0_12, %c0_13], %19 {strides = array<i32>} : memref<1x128xf32, #tpu.memory_space<vmem>>, vector<1x128xf32>,
      %cst_14 = arith.constant 0.000000e+00 : f32
      %21 = vector.broadcast %cst_14 : f32 to vector<1x128xf32>
      %c0_15 = arith.constant 0 : index
      %c0_16 = arith.constant 0 : index
      %22 = vector.load %arg9[%c0_15, %c0_16] : memref<1x128xf32, #tpu.memory_space<vmem>>, vector<1x128xf32>
      tpu.vector_store %arg9[%c0_15, %c0_16], %21 {strides = array<i32>} : memref<1x128xf32, #tpu.memory_space<vmem>>, vector<1x128xf32>,
    } else {
    }
    %c0 = arith.constant 0 : index
    %c0_2 = arith.constant 0 : index
    %5 = vector.load %arg2[%c0, %c0_2] : memref<512x40xbf16, #tpu.memory_space<vmem>>, vector<512x40xbf16>
    %c0_3 = arith.constant 0 : index
    %c0_4 = arith.constant 0 : index
    %6 = vector.load %arg7[%c0_3, %c0_4] : memref<40x128xbf16, #tpu.memory_space<vmem>>, vector<40x128xbf16>
    %cst = arith.constant dense<0.000000e+00> : vector<512x128xf32>
    %7 = tpu.matmul %5, %6, %cst {dimension_numbers = #tpu.dot_dimension_numbers<[1], [0], [0], [1], [0, 0, 1, 1], [], []>} : vector<512x40xbf16>, vector<40x128xbf16>, vector<512x128xf32> -> vector<512x128xf32>
    %c0_i32_5 = arith.constant 0 : i32
    %8 = arith.cmpi eq, %arg0, %c0_i32_5 : i32
    %9 = arith.extui %8 : i1 to i32
    %c0_i32_6 = arith.constant 0 : i32
    %10 = arith.cmpi ne, %9, %c0_i32_6 : i32
    scf.if %10 {
      %c0_11 = arith.constant 0 : index
      %c0_12 = arith.constant 0 : index
      %19 = vector.load %arg8[%c0_11, %c0_12] : memref<1x128xf32, #tpu.memory_space<vmem>>, vector<1x128xf32>
      %cst_13 = arith.constant dense<0.000000e+00> : vector<128xf32>
      %20 = vector.multi_reduction <add>, %7, %cst_13 [0] : vector<512x128xf32> to vector<128xf32>
      %21 = vector.shape_cast %20 : vector<128xf32> to vector<1x128xf32>
      %22 = arith.addf %19, %21 : vector<1x128xf32>
      %c0_14 = arith.constant 0 : index
      %c0_15 = arith.constant 0 : index
      %23 = vector.load %arg8[%c0_14, %c0_15] : memref<1x128xf32, #tpu.memory_space<vmem>>, vector<1x128xf32>
      tpu.vector_store %arg8[%c0_14, %c0_15], %22 {strides = array<i32>} : memref<1x128xf32, #tpu.memory_space<vmem>>, vector<1x128xf32>,
      %c0_16 = arith.constant 0 : index
      %c0_17 = arith.constant 0 : index
      %24 = vector.load %arg9[%c0_16, %c0_17] : memref<1x128xf32, #tpu.memory_space<vmem>>, vector<1x128xf32>
      %25 = arith.mulf %7, %7 : vector<512x128xf32>
      %cst_18 = arith.constant dense<0.000000e+00> : vector<128xf32>
      %26 = vector.multi_reduction <add>, %25, %cst_18 [0] : vector<512x128xf32> to vector<128xf32>
      %27 = vector.shape_cast %26 : vector<128xf32> to vector<1x128xf32>
      %28 = arith.addf %24, %27 : vector<1x128xf32>
      %c0_19 = arith.constant 0 : index
      %c0_20 = arith.constant 0 : index
      %29 = vector.load %arg9[%c0_19, %c0_20] : memref<1x128xf32, #tpu.memory_space<vmem>>, vector<1x128xf32>
      tpu.vector_store %arg9[%c0_19, %c0_20], %28 {strides = array<i32>} : memref<1x128xf32, #tpu.memory_space<vmem>>, vector<1x128xf32>,
    } else {
    }
    %c1_i32 = arith.constant 1 : i32
    %11 = arith.cmpi eq, %arg0, %c1_i32 : i32
    %c0_i32_7 = arith.constant 0 : i32
    %12 = arith.cmpi eq, %arg1, %c0_i32_7 : i32
    %13 = arith.andi %11, %12 : i1
    %14 = arith.extui %13 : i1 to i32
    %c0_i32_8 = arith.constant 0 : i32
    %15 = arith.cmpi ne, %14, %c0_i32_8 : i32
    scf.if %15 {
      %c0_11 = arith.constant 0 : index
      %c0_12 = arith.constant 0 : index
      %19 = vector.load %arg8[%c0_11, %c0_12] : memref<1x128xf32, #tpu.memory_space<vmem>>, vector<1x128xf32>
      %cst_13 = arith.constant 0.001953125 : f32
      %20 = vector.broadcast %cst_13 : f32 to vector<1x128xf32>
      %21 = arith.mulf %19, %20 : vector<1x128xf32>
      %c0_14 = arith.constant 0 : index
      %c0_15 = arith.constant 0 : index
      %22 = vector.load %arg9[%c0_14, %c0_15] : memref<1x128xf32, #tpu.memory_space<vmem>>, vector<1x128xf32>
      %cst_16 = arith.constant 0.001953125 : f32
      %23 = vector.broadcast %cst_16 : f32 to vector<1x128xf32>
      %24 = arith.mulf %22, %23 : vector<1x128xf32>
      %25 = arith.mulf %21, %21 : vector<1x128xf32>
      %26 = arith.subf %24, %25 : vector<1x128xf32>
      %cst_17 = arith.constant 0.000000e+00 : f32
      %27 = vector.broadcast %cst_17 : f32 to vector<1x128xf32>
      %28 = arith.maximumf %26, %27 : vector<1x128xf32>
      %cst_18 = arith.constant 9.99999974E-6 : f32
      %29 = vector.broadcast %cst_18 : f32 to vector<1x128xf32>
      %30 = arith.addf %28, %29 : vector<1x128xf32>
      %31 = math.rsqrt %30 : vector<1x128xf32>
      %c0_19 = arith.constant 0 : index
      %c0_20 = arith.constant 0 : index
      %32 = vector.load %arg4[%c0_19, %c0_20] : memref<1x128xf32, #tpu.memory_space<vmem>>, vector<1x128xf32>
      %33 = arith.mulf %32, %31 : vector<1x128xf32>
      %c0_21 = arith.constant 0 : index
      %c0_22 = arith.constant 0 : index
      %34 = vector.load %arg10[%c0_21, %c0_22] : memref<1x128xf32, #tpu.memory_space<vmem>>, vector<1x128xf32>
      tpu.vector_store %arg10[%c0_21, %c0_22], %33 {strides = array<i32>} : memref<1x128xf32, #tpu.memory_space<vmem>>, vector<1x128xf32>,
      %c0_23 = arith.constant 0 : index
      %c0_24 = arith.constant 0 : index
      %35 = vector.load %arg5[%c0_23, %c0_24] : memref<1x128xf32, #tpu.memory_space<vmem>>, vector<1x128xf32>
      %36 = arith.mulf %21, %33 : vector<1x128xf32>
      %37 = arith.subf %35, %36 : vector<1x128xf32>
      %c0_25 = arith.constant 0 : index
      %c0_26 = arith.constant 0 : index
      %38 = vector.load %arg11[%c0_25, %c0_26] : memref<1x128xf32, #tpu.memory_space<vmem>>, vector<1x128xf32>
      tpu.vector_store %arg11[%c0_25, %c0_26], %37 {strides = array<i32>} : memref<1x128xf32, #tpu.memory_space<vmem>>, vector<1x128xf32>,
    } else {
    }
    %c1_i32_9 = arith.constant 1 : i32
    %16 = arith.cmpi eq, %arg0, %c1_i32_9 : i32
    %17 = arith.extui %16 : i1 to i32
    %c0_i32_10 = arith.constant 0 : i32
    %18 = arith.cmpi ne, %17, %c0_i32_10 : i32
    scf.if %18 {
      %c0_11 = arith.constant 0 : index
      %c0_12 = arith.constant 0 : index
      %19 = vector.load %arg10[%c0_11, %c0_12] : memref<1x128xf32, #tpu.memory_space<vmem>>, vector<1x128xf32>
      %20 = vector.broadcast %19 : vector<1x128xf32> to vector<512x128xf32>
      %21 = arith.mulf %7, %20 : vector<512x128xf32>
      %c0_13 = arith.constant 0 : index
      %c0_14 = arith.constant 0 : index
      %22 = vector.load %arg11[%c0_13, %c0_14] : memref<1x128xf32, #tpu.memory_space<vmem>>, vector<1x128xf32>
      %23 = vector.broadcast %22 : vector<1x128xf32> to vector<512x128xf32>
      %24 = arith.addf %21, %23 : vector<512x128xf32>
      %cst_15 = arith.constant 0.000000e+00 : f32
      %25 = vector.broadcast %cst_15 : f32 to vector<512x128xf32>
      %26 = arith.maximumf %24, %25 : vector<512x128xf32>
      %c0_16 = arith.constant 0 : index
      %c0_17 = arith.constant 0 : index
      %27 = vector.load %arg6[%c0_16, %c0_17] : memref<512x128xf32, #tpu.memory_space<vmem>>, vector<512x128xf32>
      tpu.vector_store %arg6[%c0_16, %c0_17], %26 {strides = array<i32>} : memref<512x128xf32, #tpu.memory_space<vmem>>, vector<512x128xf32>,
    } else {
    }
    return
  }
  func.func @transform_0(%arg0: i32, %arg1: i32) -> (i32, i32) {
    %c0_i32 = arith.constant 0 : i32
    %c0_i32_0 = arith.constant 0 : i32
    return %arg1, %c0_i32 : i32, i32
  }
  func.func @transform_2(%arg0: i32, %arg1: i32) -> (i32, i32) {
    %c0_i32 = arith.constant 0 : i32
    %c0_i32_0 = arith.constant 0 : i32
    %c0_i32_1 = arith.constant 0 : i32
    return %c0_i32, %c0_i32_0 : i32, i32
  }
  func.func @transform_3(%arg0: i32, %arg1: i32) -> (i32, i32) {
    %c0_i32 = arith.constant 0 : i32
    %c0_i32_0 = arith.constant 0 : i32
    %c0_i32_1 = arith.constant 0 : i32
    return %c0_i32, %c0_i32_0 : i32, i32
  }
  func.func @transform_4(%arg0: i32, %arg1: i32) -> (i32, i32) {
    %0 = arith.muli %arg0, %arg1 : i32
    %c0_i32 = arith.constant 0 : i32
    %c0_i32_0 = arith.constant 0 : i32
    return %0, %c0_i32 : i32, i32
  }
}

</mosaic_0001>

<llo_original>
// kernel: conv2d_bn_relu.1
$region0: #{conv2d_bn_relu.1}
  #allocation0 [shape = 'u32[]', space=smem, size = 0x4, offset = 0x4, fixed_abs, tag = 'smem constant byte address 0x4 - core index']
  #allocation1 [shape = 'u32[144,128]{1,0:T(1,128)}', space=vmem, size = 0x12000, scoped, tag = 'internal scratch']
  #allocation2 [shape = 'bf16[40,128]{1,0:T(8,128)(2,1)}', space=vmem, size = 0x2800, scoped, tag = 'scratch operand']
  #allocation3 [shape = 'f32[1,128]{1,0:T(1,128)}', space=vmem, size = 0x200, scoped, tag = 'scratch operand']
  #allocation4 [shape = 'f32[1,128]{1,0:T(1,128)}', space=vmem, size = 0x200, scoped, tag = 'scratch operand']
  #allocation5 [shape = 'f32[1,128]{1,0:T(1,128)}', space=vmem, size = 0x200, scoped, tag = 'scratch operand']
  #allocation6 [shape = 'f32[1,128]{1,0:T(1,128)}', space=vmem, size = 0x200, scoped, tag = 'scratch operand']
  #allocation8 [shape = 's32[]', space=sflag, size = 0x4, offset = 0, fixed_abs, tag = 'sflag constant byte address 0x0 - dummy sync flag']
  %s0 = inlined_call_operand.vmem [shape: bf16[512,40], index: 0, kind: input, shape index: {}]
  %s1 = inlined_call_operand.vmem [shape: bf16[40,128], index: 1, kind: input, shape index: {}]
  %s2 = inlined_call_operand.vmem [shape: f32[1,128], index: 2, kind: input, shape index: {}]
  %s3 = inlined_call_operand.vmem [shape: f32[1,128], index: 3, kind: input, shape index: {}]
  %s4 = inlined_call_operand.vmem [shape: f32[512,128], index: 4, kind: output, shape index: {}]
  %s5 = sld [smem:[#allocation0]]
  $region99: #{conv2d_bn_relu.1} parent=0
    _
  %s7 = ssub.s32 1, %s5
  %s8 = scalar_select 0, %s7, %s5
  loop: start=0, step=1, limit=4
  $region2: #{conv2d_bn_relu.1} parent=0 // loop_pre_header
    _
  $region3: #{conv2d_bn_relu.1} parent=0 // loop_header
    %s10 = sphi 0, %s14
    %p11 = scmp.ge.s32.totalorder %s10, 4
    %s17 = sphi 0, %s29
    %s18 = sphi 0, %s25
    %s19 = sphi 0, %s17
    %s20 = sphi 0, %s18
    %s21 = sphi 0, %s19
    %s22 = sphi 0, %s20
    %s32 = sphi 0, %s34
    %s35 = sphi 0, %s32
    %s36 = sphi 0, %s35
    %s52 = sphi 0, %s36
    %s56 = sphi 0, %s56
    %s58 = sphi 0, %s56
    %s59 = sphi 0, %s58
    %s73 = sphi 0, %s59
    %s77 = sphi 0, %s77
    %s79 = sphi 0, %s77
    %s80 = sphi 0, %s79
    %s94 = sphi 0, %s80
    %s102 = sphi 0, %s104
    %s105 = sphi 0, %s102
    %s106 = sphi 0, %s105
    %s122 = sphi 0, %s106
  $region4: #{conv2d_bn_relu.1} parent=0 // loop_header_branch
    %13 = sbr.rel (%p11) target = $region8
  $region5: #{conv2d_bn_relu.1} parent=0 // loop_body
    %s15 = ssub.s32 %s10, 1
    %s16 = ssub.s32 %s10, 2
    %s23 = sadd.s32 1, %s18
    %p24 = scmp.ge.s32.totalorder %s23, 1
    %s25 = scalar_select %p24, 0, %s23
    %s26 = sadd.s32 1, %s17
    %s27 = scalar_select %p24, %s26, %s17
    %p28 = scmp.ge.s32.totalorder %s27, 2
    %s29 = scalar_select %p28, 0, %s27
    %s30 = ssub.s32 %s18, %s25
    %p31 = scmp.eq.s32.totalorder %s30, 0
    %s33 = sadd.s32 %s32, 1
    %s34 = scalar_select %p31, %s32, %s33
    %p37 = pneg %p31
    %p38 = scmp.eq.s32.totalorder %s10, 1
    %p39 = por %p37, %p38
    %p40 = scmp.ne.s32.totalorder %s32, %s35
    %p41 = scmp.eq.s32.totalorder %s10, 0
    %p42 = por %p40, %p41
    %p43 = scmp.ne.s32.totalorder %s32, %s35
    %p44 = scmp.eq.s32.totalorder %s15, 1
    %p45 = por %p43, %p44
    %p46 = scmp.ne.s32.totalorder %s35, %s36
    %p47 = scmp.eq.s32.totalorder %s15, 0
    %p48 = por %p46, %p47
    %p49 = scmp.ne.s32.totalorder %s35, %s36
    %p50 = scmp.eq.s32.totalorder %s16, 1
    %p51 = por %p49, %p50
    %p53 = scmp.ne.s32.totalorder %s36, %s52
    %p54 = scmp.eq.s32.totalorder %s16, 0
    %p55 = por %p53, %p54
    %s57 = sadd.s32 %s56, 1
    %p60 = scmp.eq.s32.totalorder %s10, 1
    %p61 = scmp.ne.s32.totalorder %s56, %s58
    %p62 = scmp.eq.s32.totalorder %s10, 0
    %p63 = por %p61, %p62
    %p64 = scmp.ne.s32.totalorder %s56, %s58
    %p65 = scmp.eq.s32.totalorder %s15, 1
    %p66 = por %p64, %p65
    %p67 = scmp.ne.s32.totalorder %s58, %s59
    %p68 = scmp.eq.s32.totalorder %s15, 0
    %p69 = por %p67, %p68
    %p70 = scmp.ne.s32.totalorder %s58, %s59
    %p71 = scmp.eq.s32.totalorder %s16, 1
    %p72 = por %p70, %p71
    %p74 = scmp.ne.s32.totalorder %s59, %s73
    %p75 = scmp.eq.s32.totalorder %s16, 0
    %p76 = por %p74, %p75
    %s78 = sadd.s32 %s77, 1
    %p81 = scmp.eq.s32.totalorder %s10, 1
    %p82 = scmp.ne.s32.totalorder %s77, %s79
    %p83 = scmp.eq.s32.totalorder %s10, 0
    %p84 = por %p82, %p83
    %p85 = scmp.ne.s32.totalorder %s77, %s79
    %p86 = scmp.eq.s32.totalorder %s15, 1
    %p87 = por %p85, %p86
    %p88 = scmp.ne.s32.totalorder %s79, %s80
    %p89 = scmp.eq.s32.totalorder %s15, 0
    %p90 = por %p88, %p89
    %p91 = scmp.ne.s32.totalorder %s79, %s80
    %p92 = scmp.eq.s32.totalorder %s16, 1
    %p93 = por %p91, %p92
    %p95 = scmp.ne.s32.totalorder %s80, %s94
    %p96 = scmp.eq.s32.totalorder %s16, 0
    %p97 = por %p95, %p96
    %s98 = smul.u32 %s17, %s18
    %s99 = smul.u32 %s29, %s25
    %s100 = ssub.s32 %s98, %s99
    %p101 = scmp.eq.s32.totalorder %s100, 0
    %s103 = sadd.s32 %s102, 1
    %s104 = scalar_select %p101, %s102, %s103
    %p107 = pneg %p101
    %p108 = scmp.eq.s32.totalorder %s10, 1
    %p109 = por %p107, %p108
    %p110 = scmp.ne.s32.totalorder %s102, %s105
    %p111 = scmp.eq.s32.totalorder %s10, 0
    %p112 = por %p110, %p111
    %p113 = scmp.ne.s32.totalorder %s102, %s105
    %p114 = scmp.eq.s32.totalorder %s15, 1
    %p115 = por %p113, %p114
    %p116 = scmp.ne.s32.totalorder %s105, %s106
    %p117 = scmp.eq.s32.totalorder %s15, 0
    %p118 = por %p116, %p117
    %p119 = scmp.ne.s32.totalorder %s105, %s106
    %p120 = scmp.eq.s32.totalorder %s16, 1
    %p121 = por %p119, %p120
    %p123 = scmp.ne.s32.totalorder %s106, %s122
    %p124 = scmp.eq.s32.totalorder %s16, 0
    %p125 = por %p123, %p124
    %p126 = scmp.le.s32.totalorder 1, %s10
    %p127 = scmp.lt.s32.totalorder %s10, 3
    %p128 = pnand %p126, %p127
    %p129 = pneg %p128
    // Predicated region
    $region9: #{conv2d_bn_relu.1} parent=5 // pred_check
      _
    $region10: #{conv2d_bn_relu.1} parent=5 // pred_check_branch
      %131 = sbr.rel (%p128) target = $region12
    $region11: #{conv2d_bn_relu.1} parent=5 // pred_region
      %s132 = ssub.s32 %s10, 1
      // Predicated region
      $region13: #{conv2d_bn_relu.1} parent=11 // pred_check
        %p133 = pneg %p48
      $region14: #{conv2d_bn_relu.1} parent=11 // pred_check_branch
        %135 = sbr.rel (%p133) target = $region16
      $region15: #{conv2d_bn_relu.1} parent=11 // pred_region
        %s136 = smul.u32 64, %s20
        %p137 = scmp.lt.s32.totalorder %s136, 63
        %s138 = scalar_select %p137, %s136, 63
        %s139 = smul.addr %s138, 4
        %s140 = scalar_lea.vmem %s0, %s139
        %s141 = smul.u32 64, %s20
      $region16: #{conv2d_bn_relu.1} parent=11 // pred_fallthru
        _
      // Predicated region
      $region17: #{conv2d_bn_relu.1} parent=11 // pred_check
        %p142 = pneg %p69
      $region18: #{conv2d_bn_relu.1} parent=11 // pred_check_branch
        %144 = sbr.rel (%p142) target = $region20
      $region19: #{conv2d_bn_relu.1} parent=11 // pred_region
        _
      $region20: #{conv2d_bn_relu.1} parent=11 // pred_fallthru
        _
      // Predicated region
      $region21: #{conv2d_bn_relu.1} parent=11 // pred_check
        %p145 = pneg %p90
      $region22: #{conv2d_bn_relu.1} parent=11 // pred_check_branch
        %147 = sbr.rel (%p145) target = $region24
      $region23: #{conv2d_bn_relu.1} parent=11 // pred_region
        _
      $region24: #{conv2d_bn_relu.1} parent=11 // pred_fallthru
        _
    $region12: #{conv2d_bn_relu.1} parent=5 // pred_fallthru
      _
    %p148 = scmp.lt.s32.totalorder %s10, 2
    // Predicated region
    $region25: #{conv2d_bn_relu.1} parent=5 // pred_check
      %p149 = pneg %p148
    $region26: #{conv2d_bn_relu.1} parent=5 // pred_check_branch
      %151 = sbr.rel (%p149) target = $region28
    $region27: #{conv2d_bn_relu.1} parent=5 // pred_region
      _
    $region28: #{conv2d_bn_relu.1} parent=5 // pred_fallthru
      _
    %p152 = scmp.le.s32.totalorder 1, %s10
    %p153 = scmp.lt.s32.totalorder %s10, 3
    %p154 = pnand %p152, %p153
    %p155 = pneg %p154
    // Predicated region
    $region29: #{conv2d_bn_relu.1} parent=5 // pred_check
      _
    $region30: #{conv2d_bn_relu.1} parent=5 // pred_check_branch
      %157 = sbr.rel (%p154) target = $region32
    $region31: #{conv2d_bn_relu.1} parent=5 // pred_region
      %s158 = ssub.s32 %s10, 1
      %s159 = smul.u32 64, %s20
      %p160 = scmp.lt.s32.totalorder %s159, 63
      %s161 = scalar_select %p160, %s159, 63
      %s162 = smul.addr %s161, 4
      %s163 = scalar_lea.vmem %s0, %s162
      %p164 = pneg %p48
      %p165 = pneg %p45
      %p166 = pneg %p69
      %p167 = pneg %p66
      %p168 = pneg %p90
      %p169 = pneg %p87
      %p170 = pneg %p118
      %p171 = pneg %p115
      %s172 = smul.u32 %s19, %s20
      %s173 = smul.u32 64, %s172
      %p174 = scmp.lt.s32.totalorder %s173, 63
      %s175 = scalar_select %p174, %s173, 63
      %s176 = smul.addr %s175, 8
      %s177 = scalar_lea.vmem %s4, %s176
      %s178 = smul.u32 64, %s20
      %p179 = scmp.lt.s32.totalorder %s178, 63
      %s180 = scalar_select %p179, %s178, 63
      %s181 = smul.addr %s180, 4
      %s182 = scalar_lea.vmem %s0, %s181
      %s183 = smul.u32 64, %s20
      %s184 = smul.u32 %s19, %s20
      %s185 = smul.u32 64, %s184
      %p186 = scmp.lt.s32.totalorder %s185, 63
      %s187 = scalar_select %p186, %s185, 63
      %s188 = smul.addr %s187, 8
      %s189 = scalar_lea.vmem %s4, %s188
      %s190 = smul.u32 %s19, %s20
      %s191 = smul.u32 64, %s190
      %p193 = scmp.eq.s32.totalorder %s19, 0
      %p194 = scmp.eq.s32.totalorder %s20, 0
      %p195 = pnand %p193, %p194
      %p196 = pneg %p195
      // Predicated region
      $region33: #{conv2d_bn_relu.1} parent=31 // pred_check
        _
      $region34: #{conv2d_bn_relu.1} parent=31 // pred_check_branch
        %198 = sbr.rel (%p195) target = $region36
      $region35: #{conv2d_bn_relu.1} parent=31 // pred_region
        $region37: #{conv2d_bn_relu.1} parent=35
          #allocation7 [shape = 's32[1]{0}', space=sflag, size = 0x4, scoped, tag = 'scoped memory for conv2d_bn_relu.1']
          %p200 = scmp.lt.u32.totalorder 20, 8
          %p201 = pneg %p200
          // Predicated region
          $region38: #{conv2d_bn_relu.1} parent=37 // pred_check
            _
          $region39: #{conv2d_bn_relu.1} parent=37 // pred_check_branch
            %203 = sbr.rel (%p200) target = $region41
          $region40: #{conv2d_bn_relu.1} parent=37 // pred_region
            %s218 = sand.u32 20, 7
            %p219 = scmp.eq.s32.totalorder %s218, 0
            %p220 = pneg %p219
            // Predicated region
            $region53: #{conv2d_bn_relu.1} parent=40 // pred_check
              _
            $region54: #{conv2d_bn_relu.1} parent=40 // pred_check_branch
              %222 = sbr.rel (%p219) target = $region56
            $region55: #{conv2d_bn_relu.1} parent=40 // pred_region
              %s223 = sand.u32 20, 7
              %s224 = ssub.s32 20, %s223
              %s225 = scalar_lea.vmem %s1, %s224
              %s226 = ssub.s32 20, %s223
              %s227 = scalar_lea.vmem [#allocation2], %s226
              loop: start=0, step=1, limit=1
              $region57: #{conv2d_bn_relu.1} parent=55 // loop_pre_header
                _
              $region58: #{conv2d_bn_relu.1} parent=55 // loop_header
                %s229 = sphi 0, %s233
                %p230 = scmp.ge.s32.totalorder %s229, 1
                %s234 = sphi %s1, %s1
                %s235 = sphi [#allocation2], [#allocation2]
              $region59: #{conv2d_bn_relu.1} parent=55 // loop_header_branch
                %232 = sbr.rel (%p230) target = $region63
              $region60: #{conv2d_bn_relu.1} parent=55 // loop_body
                %v236 = vld [vmem:[%s234] sm:$0xff]
                %237 = vst [vmem:[%s235] sm:$0xff] %v236
                %v238 = vld [vmem:[%s234 + $0x8] sm:$0xff]
                %239 = vst [vmem:[%s235 + $0x8] sm:$0xff] %v238
              $region61: #{conv2d_bn_relu.1} parent=55 // loop_footer
                %s233 = sadd.s32 1, %s229
              $region62: #{conv2d_bn_relu.1} parent=55 // loop_footer_branch
                %228 = sbr.rel target = $region58
              $region63: #{conv2d_bn_relu.1} parent=55 // loop_exit
                _
              %s240 = sshllo.u32 0, %s223
              loop: start=0, step=1, limit=1
              $region64: #{conv2d_bn_relu.1} parent=55 // loop_pre_header
                _
              $region65: #{conv2d_bn_relu.1} parent=55 // loop_header
                %s242 = sphi 0, %s246
                %p243 = scmp.ge.s32.totalorder %s242, 1
                %s247 = sphi %s225, %s225
                %s248 = sphi %s227, %s227
              $region66: #{conv2d_bn_relu.1} parent=55 // loop_header_branch
                %245 = sbr.rel (%p243) target = $region70
              $region67: #{conv2d_bn_relu.1} parent=55 // loop_body
                %v249 = vld [vmem:[%s247] sm:%s240]
                %250 = vst [vmem:[%s248] sm:%s240] %v249
              $region68: #{conv2d_bn_relu.1} parent=55 // loop_footer
                %s246 = sadd.s32 1, %s242
              $region69: #{conv2d_bn_relu.1} parent=55 // loop_footer_branch
                %241 = sbr.rel target = $region65
              $region70: #{conv2d_bn_relu.1} parent=55 // loop_exit
                _
            $region56: #{conv2d_bn_relu.1} parent=40 // pred_fallthru
              _
          $region41: #{conv2d_bn_relu.1} parent=37 // pred_fallthru
            _
          // Predicated region
          $region42: #{conv2d_bn_relu.1} parent=37 // pred_check
            %p204 = pneg %p200
          $region43: #{conv2d_bn_relu.1} parent=37 // pred_check_branch
            %206 = sbr.rel (%p204) target = $region45
          $region44: #{conv2d_bn_relu.1} parent=37 // pred_region
            %s207 = sshllo.u32 0, 20
            loop: start=0, step=1, limit=1
            $region46: #{conv2d_bn_relu.1} parent=44 // loop_pre_header
              _
            $region47: #{conv2d_bn_relu.1} parent=44 // loop_header
              %s209 = sphi 0, %s213
              %p210 = scmp.ge.s32.totalorder %s209, 1
              %s214 = sphi %s1, %s1
              %s215 = sphi [#allocation2], [#allocation2]
            $region48: #{conv2d_bn_relu.1} parent=44 // loop_header_branch
              %212 = sbr.rel (%p210) target = $region52
            $region49: #{conv2d_bn_relu.1} parent=44 // loop_body
              %v216 = vld [vmem:[%s214] sm:%s207]
              %217 = vst [vmem:[%s215] sm:%s207] %v216
            $region50: #{conv2d_bn_relu.1} parent=44 // loop_footer
              %s213 = sadd.s32 1, %s209
            $region51: #{conv2d_bn_relu.1} parent=44 // loop_footer_branch
              %208 = sbr.rel target = $region47
            $region52: #{conv2d_bn_relu.1} parent=44 // loop_exit
              _
          $region45: #{conv2d_bn_relu.1} parent=37 // pred_fallthru
            _
          // Predicated region
          $region71: #{conv2d_bn_relu.1} parent=37 // pred_check
            _
          $region72: #{conv2d_bn_relu.1} parent=37 // pred_check_branch
            %253 = sbr.rel (0) target = $region74
          $region73: #{conv2d_bn_relu.1} parent=37 // pred_region
            %254 = vsyncadd [#allocation7], 320
          $region74: #{conv2d_bn_relu.1} parent=37 // pred_fallthru
            _
          %s255 = smul.u32 4, 5
          %s256 = smul.u32 %s255, 1
          %s257 = sshll.u32 %s256, 4
          %258 = dma.done [#allocation7], %s257
        %259 = vst [vmem:[#allocation3] sm:$0x1] 0.0
        %260 = vst [vmem:[#allocation4] sm:$0x1] 0.0
      $region36: #{conv2d_bn_relu.1} parent=31 // pred_fallthru
        _
      %v261 = vld [vmem:[%s182] sm:$0xf]
      %v262 = vld [vmem:[%s182 + $0x4] sm:$0xf]
      %v263 = vld [vmem:[%s182 + $0x8] sm:$0xf]
      %v264 = vld [vmem:[%s182 + $0xc] sm:$0xf]
      %v265 = vld [vmem:[%s182 + $0x10] sm:$0xf]
      %v266 = vld [vmem:[%s182 + $0x14] sm:$0xf]
      %v267 = vld [vmem:[%s182 + $0x18] sm:$0xf]
      %v268 = vld [vmem:[%s182 + $0x1c] sm:$0xf]
      %v269 = vld [vmem:[%s182 + $0x20] sm:$0xf]
      %v270 = vld [vmem:[%s182 + $0x24] sm:$0xf]
      %v271 = vld [vmem:[%s182 + $0x28] sm:$0xf]
      %v272 = vld [vmem:[%s182 + $0x2c] sm:$0xf]
      %v273 = vld [vmem:[%s182 + $0x30] sm:$0xf]
      %v274 = vld [vmem:[%s182 + $0x34] sm:$0xf]
      %v275 = vld [vmem:[%s182 + $0x38] sm:$0xf]
      %v276 = vld [vmem:[%s182 + $0x3c] sm:$0xf]
      %v277 = vld [vmem:[%s182 + $0x40] sm:$0xf]
      %v278 = vld [vmem:[%s182 + $0x44] sm:$0xf]
      %v279 = vld [vmem:[%s182 + $0x48] sm:$0xf]
      %v280 = vld [vmem:[%s182 + $0x4c] sm:$0xf]
      %v281 = vld [vmem:[%s182 + $0x50] sm:$0xf]
      %v282 = vld [vmem:[%s182 + $0x54] sm:$0xf]
      %v283 = vld [vmem:[%s182 + $0x58] sm:$0xf]
      %v284 = vld [vmem:[%s182 + $0x5c] sm:$0xf]
      %v285 = vld [vmem:[%s182 + $0x60] sm:$0xf]
      %v286 = vld [vmem:[%s182 + $0x64] sm:$0xf]
      %v287 = vld [vmem:[%s182 + $0x68] sm:$0xf]
      %v288 = vld [vmem:[%s182 + $0x6c] sm:$0xf]
      %v289 = vld [vmem:[%s182 + $0x70] sm:$0xf]
      %v290 = vld [vmem:[%s182 + $0x74] sm:$0xf]
      %v291 = vld [vmem:[%s182 + $0x78] sm:$0xf]
      %v292 = vld [vmem:[%s182 + $0x7c] sm:$0xf]
      %v293 = vld [vmem:[%s182 + $0x80] sm:$0xf]
      %v294 = vld [vmem:[%s182 + $0x84] sm:$0xf]
      %v295 = vld [vmem:[%s182 + $0x88] sm:$0xf]
      %v296 = vld [vmem:[%s182 + $0x8c] sm:$0xf]
      %v297 = vld [vmem:[%s182 + $0x90] sm:$0xf]
      %v298 = vld [vmem:[%s182 + $0x94] sm:$0xf]
      %v299 = vld [vmem:[%s182 + $0x98] sm:$0xf]
      %v300 = vld [vmem:[%s182 + $0x9c] sm:$0xf]
      %v301 = vld [vmem:[%s182 + $0xa0] sm:$0xf]
      %v302 = vld [vmem:[%s182 + $0xa4] sm:$0xf]
      %v303 = vld [vmem:[%s182 + $0xa8] sm:$0xf]
      %v304 = vld [vmem:[%s182 + $0xac] sm:$0xf]
      %v305 = vld [vmem:[%s182 + $0xb0] sm:$0xf]
      %v306 = vld [vmem:[%s182 + $0xb4] sm:$0xf]
      %v307 = vld [vmem:[%s182 + $0xb8] sm:$0xf]
      %v308 = vld [vmem:[%s182 + $0xbc] sm:$0xf]
      %v309 = vld [vmem:[%s182 + $0xc0] sm:$0xf]
      %v310 = vld [vmem:[%s182 + $0xc4] sm:$0xf]
      %v311 = vld [vmem:[%s182 + $0xc8] sm:$0xf]
      %v312 = vld [vmem:[%s182 + $0xcc] sm:$0xf]
      %v313 = vld [vmem:[%s182 + $0xd0] sm:$0xf]
      %v314 = vld [vmem:[%s182 + $0xd4] sm:$0xf]
      %v315 = vld [vmem:[%s182 + $0xd8] sm:$0xf]
      %v316 = vld [vmem:[%s182 + $0xdc] sm:$0xf]
      %v317 = vld [vmem:[%s182 + $0xe0] sm:$0xf]
      %v318 = vld [vmem:[%s182 + $0xe4] sm:$0xf]
      %v319 = vld [vmem:[%s182 + $0xe8] sm:$0xf]
      %v320 = vld [vmem:[%s182 + $0xec] sm:$0xf]
      %v321 = vld [vmem:[%s182 + $0xf0] sm:$0xf]
      %v322 = vld [vmem:[%s182 + $0xf4] sm:$0xf]
      %v323 = vld [vmem:[%s182 + $0xf8] sm:$0xf]
      %v324 = vld [vmem:[%s182 + $0xfc] sm:$0xf]
      %v325 = vld [vmem:[#allocation2] sm:$0xf]
      %v326 = vld [vmem:[#allocation2 + $0x4] sm:$0xf]
      %v327 = vld [vmem:[#allocation2 + $0x8] sm:$0xf]
      %v328 = vld [vmem:[#allocation2 + $0xc] sm:$0xf]
      %v329 = vld [vmem:[#allocation2 + $0x10] sm:$0xf]
      %v394 = vunpack.c.l.b16 %v261
      %v395 = vunpack.c.l.b16 %v262
      %v396 = vunpack.c.l.b16 %v263
      %v397 = vunpack.c.l.b16 %v264
      %v398 = vunpack.c.l.b16 %v265
      %v399 = vunpack.c.l.b16 %v266
      %v400 = vunpack.c.l.b16 %v267
      %v401 = vunpack.c.l.b16 %v268
      %v402 = vunpack.c.l.b16 %v269
      %v403 = vunpack.c.l.b16 %v270
      %v404 = vunpack.c.l.b16 %v271
      %v405 = vunpack.c.l.b16 %v272
      %v406 = vunpack.c.l.b16 %v273
      %v407 = vunpack.c.l.b16 %v274
      %v408 = vunpack.c.l.b16 %v275
      %v409 = vunpack.c.l.b16 %v276
      %v410 = vunpack.c.l.b16 %v277
      %v411 = vunpack.c.l.b16 %v278
      %v412 = vunpack.c.l.b16 %v279
      %v413 = vunpack.c.l.b16 %v280
      %v414 = vunpack.c.l.b16 %v281
      %v415 = vunpack.c.l.b16 %v282
      %v416 = vunpack.c.l.b16 %v283
      %v417 = vunpack.c.l.b16 %v284
      %v418 = vunpack.c.l.b16 %v285
      %v419 = vunpack.c.l.b16 %v286
      %v420 = vunpack.c.l.b16 %v287
      %v421 = vunpack.c.l.b16 %v288
      %v422 = vunpack.c.l.b16 %v289
      %v423 = vunpack.c.l.b16 %v290
      %v424 = vunpack.c.l.b16 %v291
      %v425 = vunpack.c.l.b16 %v292
      %v426 = vunpack.c.l.b16 %v293
      %v427 = vunpack.c.l.b16 %v294
      %v428 = vunpack.c.l.b16 %v295
      %v429 = vunpack.c.l.b16 %v296
      %v430 = vunpack.c.l.b16 %v297
      %v431 = vunpack.c.l.b16 %v298
      %v432 = vunpack.c.l.b16 %v299
      %v433 = vunpack.c.l.b16 %v300
      %v434 = vunpack.c.l.b16 %v301
      %v435 = vunpack.c.l.b16 %v302
      %v436 = vunpack.c.l.b16 %v303
      %v437 = vunpack.c.l.b16 %v304
      %v438 = vunpack.c.l.b16 %v305
      %v439 = vunpack.c.l.b16 %v306
      %v440 = vunpack.c.l.b16 %v307
      %v441 = vunpack.c.l.b16 %v308
      %v442 = vunpack.c.l.b16 %v309
      %v443 = vunpack.c.l.b16 %v310
      %v444 = vunpack.c.l.b16 %v311
      %v445 = vunpack.c.l.b16 %v312
      %v446 = vunpack.c.l.b16 %v313
      %v447 = vunpack.c.l.b16 %v314
      %v448 = vunpack.c.l.b16 %v315
      %v449 = vunpack.c.l.b16 %v316
      %v450 = vunpack.c.l.b16 %v317
      %v451 = vunpack.c.l.b16 %v318
      %v452 = vunpack.c.l.b16 %v319
      %v453 = vunpack.c.l.b16 %v320
      %v454 = vunpack.c.l.b16 %v321
      %v455 = vunpack.c.l.b16 %v322
      %v456 = vunpack.c.l.b16 %v323
      %v457 = vunpack.c.l.b16 %v324
      %v458 = vpack.c.b16 %v395, %v394
      %v459 = vpack.c.b16 %v397, %v396
      %v460 = vpack.c.b16 %v399, %v398
      %v461 = vpack.c.b16 %v401, %v400
      %v462 = vpack.c.b16 %v403, %v402
      %v463 = vpack.c.b16 %v405, %v404
      %v464 = vpack.c.b16 %v407, %v406
      %v465 = vpack.c.b16 %v409, %v408
      %v466 = vpack.c.b16 %v411, %v410
      %v467 = vpack.c.b16 %v413, %v412
      %v468 = vpack.c.b16 %v415, %v414
      %v469 = vpack.c.b16 %v417, %v416
      %v470 = vpack.c.b16 %v419, %v418
      %v471 = vpack.c.b16 %v421, %v420
      %v472 = vpack.c.b16 %v423, %v422
      %v473 = vpack.c.b16 %v425, %v424
      %v474 = vpack.c.b16 %v427, %v426
      %v475 = vpack.c.b16 %v429, %v428
      %v476 = vpack.c.b16 %v431, %v430
      %v477 = vpack.c.b16 %v433, %v432
      %v478 = vpack.c.b16 %v435, %v434
      %v479 = vpack.c.b16 %v437, %v436
      %v480 = vpack.c.b16 %v439, %v438
      %v481 = vpack.c.b16 %v441, %v440
      %v482 = vpack.c.b16 %v443, %v442
      %v483 = vpack.c.b16 %v445, %v444
      %v484 = vpack.c.b16 %v447, %v446
      %v485 = vpack.c.b16 %v449, %v448
      %v486 = vpack.c.b16 %v451, %v450
      %v487 = vpack.c.b16 %v453, %v452
      %v488 = vpack.c.b16 %v455, %v454
      %v489 = vpack.c.b16 %v457, %v456
      %v495 = vunpack.c.l.b16 %v325
      %v496 = vunpack.c.l.b16 %v326
      %v497 = vunpack.c.l.b16 %v327
      %v498 = vunpack.c.l.b16 %v328
      %v499 = vunpack.c.l.b16 %v329
      %v500 = vpack.c.b16 %v496, %v495
      %v501 = vpack.c.b16 %v498, %v497
      %v502 = vpack.c.b16 %v499, %v499
      %vm505 = vcmask 326656
      %v507 = vsel %vm505, %v458, 0
      %v510 = vsel %vm505, %v459, 0
      %v513 = vsel %vm505, %v460, 0
      %v516 = vsel %vm505, %v461, 0
      %v519 = vsel %vm505, %v462, 0
      %v522 = vsel %vm505, %v463, 0
      %v525 = vsel %vm505, %v464, 0
      %v528 = vsel %vm505, %v465, 0
      %v531 = vsel %vm505, %v466, 0
      %v534 = vsel %vm505, %v467, 0
      %v537 = vsel %vm505, %v468, 0
      %v540 = vsel %vm505, %v469, 0
      %v543 = vsel %vm505, %v470, 0
      %v546 = vsel %vm505, %v471, 0
      %v549 = vsel %vm505, %v472, 0
      %v552 = vsel %vm505, %v473, 0
      %v555 = vsel %vm505, %v474, 0
      %v558 = vsel %vm505, %v475, 0
      %v561 = vsel %vm505, %v476, 0
      %v564 = vsel %vm505, %v477, 0
      %v567 = vsel %vm505, %v478, 0
      %v570 = vsel %vm505, %v479, 0
      %v573 = vsel %vm505, %v480, 0
      %v576 = vsel %vm505, %v481, 0
      %v579 = vsel %vm505, %v482, 0
      %v582 = vsel %vm505, %v483, 0
      %v585 = vsel %vm505, %v484, 0
      %v588 = vsel %vm505, %v485, 0
      %v591 = vsel %vm505, %v486, 0
      %v594 = vsel %vm505, %v487, 0
      %v597 = vsel %vm505, %v488, 0
      %v600 = vsel %vm505, %v489, 0
      %vm602 = vcmask 1043456
      %v604 = vsel %vm602, %v502, 0
      %606 = vmatprep.subr.bf16.mxu0 0
      %607 = vmatpush1.bf16.msra.mxu0 %v500
      %608 = vmatprep.subr.bf16.mxu0 0
      %609 = vmatpush1.bf16.msra.mxu0 %v501
      %610 = vmatprep.subr.bf16.mxu0 0
      %611 = vmatpush1.bf16.msra.mxu0 %v604
      %612 = vmatprep.subr.bf16.mxu0 0
      %613 = vmatpush1.bf16.msra.mxu0 0
      %614 = vmatprep.subr.bf16.mxu0 0
      %615 = vmatpush1.bf16.msra.mxu0 0
      %616 = vmatprep.subr.bf16.mxu0 0
      %617 = vmatpush1.bf16.msra.mxu0 0
      %618 = vmatprep.subr.bf16.mxu0 0
      %619 = vmatpush1.bf16.msra.mxu0 0
      %620 = vmatprep.subr.bf16.mxu0 0
      %621 = vmatpush1.bf16.msra.mxu0 0
      %622 = vmatprep.subr.bf16.mxu0 0
      %623 = vmatpush1.bf16.msra.mxu0 0
      %624 = vmatprep.subr.bf16.mxu0 0
      %625 = vmatpush1.bf16.msra.mxu0 0
      %626 = vmatprep.subr.bf16.mxu0 0
      %627 = vmatpush1.bf16.msra.mxu0 0
      %628 = vmatprep.subr.bf16.mxu0 0
      %629 = vmatpush1.bf16.msra.mxu0 0
      %630 = vmatprep.subr.bf16.mxu0 0
      %631 = vmatpush1.bf16.msra.mxu0 0
      %632 = vmatprep.subr.bf16.mxu0 0
      %633 = vmatpush1.bf16.msra.mxu0 0
      %634 = vmatprep.subr.bf16.mxu0 0
      %635 = vmatpush1.bf16.msra.mxu0 0
      %636 = vmatprep.subr.bf16.mxu0 0
      %637 = vmatpush1.bf16.msra.mxu0 0
      %638 = vmatprep.mubr.bf16.mxu0 0
      %639 = vmatmul.mubr.bf16.gmra.mrb[0].mxu0 %v507
      %v640 = vpop.f32.mrb[0].mxu0
      %v641 = vadd.f32 0.0, %v640
      %v642 = vpop.f32.mrb[0].mxu0
      %v643 = vpop.f32.mrb[0].mxu0
      %v644 = vadd.f32 0.0, %v643
      %v645 = vpop.f32.mrb[0].mxu0
      %646 = vmatprep.mubr.bf16.mxu0 0
      %647 = vmatmul.mubr.bf16.gmra.mrb[0].mxu0 %v510
      %v648 = vpop.f32.mrb[0].mxu0
      %v649 = vadd.f32 0.0, %v648
      %v650 = vpop.f32.mrb[0].mxu0
      %v651 = vpop.f32.mrb[0].mxu0
      %v652 = vadd.f32 0.0, %v651
      %v653 = vpop.f32.mrb[0].mxu0
      %654 = vmatprep.mubr.bf16.mxu0 0
      %655 = vmatmul.mubr.bf16.gmra.mrb[0].mxu0 %v513
      %v656 = vpop.f32.mrb[0].mxu0
      %v657 = vadd.f32 0.0, %v656
      %v658 = vpop.f32.mrb[0].mxu0
      %v659 = vpop.f32.mrb[0].mxu0
      %v660 = vadd.f32 0.0, %v659
      %v661 = vpop.f32.mrb[0].mxu0
      %662 = vmatprep.mubr.bf16.mxu0 0
      %663 = vmatmul.mubr.bf16.gmra.mrb[0].mxu0 %v516
      %v664 = vpop.f32.mrb[0].mxu0
      %v665 = vadd.f32 0.0, %v664
      %v666 = vpop.f32.mrb[0].mxu0
      %v667 = vpop.f32.mrb[0].mxu0
      %v668 = vadd.f32 0.0, %v667
      %v669 = vpop.f32.mrb[0].mxu0
      %670 = vmatprep.mubr.bf16.mxu0 0
      %671 = vmatmul.mubr.bf16.gmra.mrb[0].mxu0 %v519
      %v672 = vpop.f32.mrb[0].mxu0
      %v673 = vadd.f32 0.0, %v672
      %v674 = vpop.f32.mrb[0].mxu0
      %v675 = vpop.f32.mrb[0].mxu0
      %v676 = vadd.f32 0.0, %v675
      %v677 = vpop.f32.mrb[0].mxu0
      %678 = vmatprep.mubr.bf16.mxu0 0
      %679 = vmatmul.mubr.bf16.gmra.mrb[0].mxu0 %v522
      %v680 = vpop.f32.mrb[0].mxu0
      %v681 = vadd.f32 0.0, %v680
      %v682 = vpop.f32.mrb[0].mxu0
      %v683 = vpop.f32.mrb[0].mxu0
      %v684 = vadd.f32 0.0, %v683
      %v685 = vpop.f32.mrb[0].mxu0
      %686 = vmatprep.mubr.bf16.mxu0 0
      %687 = vmatmul.mubr.bf16.gmra.mrb[0].mxu0 %v525
      %v688 = vpop.f32.mrb[0].mxu0
      %v689 = vadd.f32 0.0, %v688
      %v690 = vpop.f32.mrb[0].mxu0
      %v691 = vpop.f32.mrb[0].mxu0
      %v692 = vadd.f32 0.0, %v691
      %v693 = vpop.f32.mrb[0].mxu0
      %694 = vmatprep.mubr.bf16.mxu0 0
      %695 = vmatmul.mubr.bf16.gmra.mrb[0].mxu0 %v528
      %v696 = vpop.f32.mrb[0].mxu0
      %v697 = vadd.f32 0.0, %v696
      %v698 = vpop.f32.mrb[0].mxu0
      %v699 = vpop.f32.mrb[0].mxu0
      %v700 = vadd.f32 0.0, %v699
      %v701 = vpop.f32.mrb[0].mxu0
      %702 = vmatprep.mubr.bf16.mxu0 0
      %703 = vmatmul.mubr.bf16.gmra.mrb[0].mxu0 %v531
      %v704 = vpop.f32.mrb[0].mxu0
      %v705 = vadd.f32 0.0, %v704
      %v706 = vpop.f32.mrb[0].mxu0
      %v707 = vpop.f32.mrb[0].mxu0
      %v708 = vadd.f32 0.0, %v707
      %v709 = vpop.f32.mrb[0].mxu0
      %710 = vmatprep.mubr.bf16.mxu0 0
      %711 = vmatmul.mubr.bf16.gmra.mrb[0].mxu0 %v534
      %v712 = vpop.f32.mrb[0].mxu0
      %v713 = vadd.f32 0.0, %v712
      %v714 = vpop.f32.mrb[0].mxu0
      %v715 = vpop.f32.mrb[0].mxu0
      %v716 = vadd.f32 0.0, %v715
      %v717 = vpop.f32.mrb[0].mxu0
      %718 = vmatprep.mubr.bf16.mxu0 0
      %719 = vmatmul.mubr.bf16.gmra.mrb[0].mxu0 %v537
      %v720 = vpop.f32.mrb[0].mxu0
      %v721 = vadd.f32 0.0, %v720
      %v722 = vpop.f32.mrb[0].mxu0
      %v723 = vpop.f32.mrb[0].mxu0
      %v724 = vadd.f32 0.0, %v723
      %v725 = vpop.f32.mrb[0].mxu0
      %726 = vmatprep.mubr.bf16.mxu0 0
      %727 = vmatmul.mubr.bf16.gmra.mrb[0].mxu0 %v540
      %v728 = vpop.f32.mrb[0].mxu0
      %v729 = vadd.f32 0.0, %v728
      %v730 = vpop.f32.mrb[0].mxu0
      %v731 = vpop.f32.mrb[0].mxu0
      %v732 = vadd.f32 0.0, %v731
      %v733 = vpop.f32.mrb[0].mxu0
      %734 = vmatprep.mubr.bf16.mxu0 0
      %735 = vmatmul.mubr.bf16.gmra.mrb[0].mxu0 %v543
      %v736 = vpop.f32.mrb[0].mxu0
      %v737 = vadd.f32 0.0, %v736
      %v738 = vpop.f32.mrb[0].mxu0
      %v739 = vpop.f32.mrb[0].mxu0
      %v740 = vadd.f32 0.0, %v739
      %v741 = vpop.f32.mrb[0].mxu0
      %742 = vmatprep.mubr.bf16.mxu0 0
      %743 = vmatmul.mubr.bf16.gmra.mrb[0].mxu0 %v546
      %v744 = vpop.f32.mrb[0].mxu0
      %v745 = vadd.f32 0.0, %v744
      %v746 = vpop.f32.mrb[0].mxu0
      %v747 = vpop.f32.mrb[0].mxu0
      %v748 = vadd.f32 0.0, %v747
      %v749 = vpop.f32.mrb[0].mxu0
      %750 = vmatprep.mubr.bf16.mxu0 0
      %751 = vmatmul.mubr.bf16.gmra.mrb[0].mxu0 %v549
      %v752 = vpop.f32.mrb[0].mxu0
      %v753 = vadd.f32 0.0, %v752
      %v754 = vpop.f32.mrb[0].mxu0
      %v755 = vpop.f32.mrb[0].mxu0
      %v756 = vadd.f32 0.0, %v755
      %v757 = vpop.f32.mrb[0].mxu0
      %758 = vmatprep.mubr.bf16.mxu0 0
      %759 = vmatmul.mubr.bf16.gmra.mrb[0].mxu0 %v552
      %v760 = vpop.f32.mrb[0].mxu0
      %v761 = vadd.f32 0.0, %v760
      %v762 = vpop.f32.mrb[0].mxu0
      %v763 = vpop.f32.mrb[0].mxu0
      %v764 = vadd.f32 0.0, %v763
      %v765 = vpop.f32.mrb[0].mxu0
      %766 = vmatprep.mubr.bf16.mxu0 0
      %767 = vmatmul.mubr.bf16.gmra.mrb[0].mxu0 %v555
      %v768 = vpop.f32.mrb[0].mxu0
      %v769 = vadd.f32 0.0, %v768
      %v770 = vpop.f32.mrb[0].mxu0
      %v771 = vpop.f32.mrb[0].mxu0
      %v772 = vadd.f32 0.0, %v771
      %v773 = vpop.f32.mrb[0].mxu0
      %774 = vmatprep.mubr.bf16.mxu0 0
      %775 = vmatmul.mubr.bf16.gmra.mrb[0].mxu0 %v558
      %v776 = vpop.f32.mrb[0].mxu0
      %v777 = vadd.f32 0.0, %v776
      %v778 = vpop.f32.mrb[0].mxu0
      %v779 = vpop.f32.mrb[0].mxu0
      %v780 = vadd.f32 0.0, %v779
      %v781 = vpop.f32.mrb[0].mxu0
      %782 = vmatprep.mubr.bf16.mxu0 0
      %783 = vmatmul.mubr.bf16.gmra.mrb[0].mxu0 %v561
      %v784 = vpop.f32.mrb[0].mxu0
      %v785 = vadd.f32 0.0, %v784
      %v786 = vpop.f32.mrb[0].mxu0
      %v787 = vpop.f32.mrb[0].mxu0
      %v788 = vadd.f32 0.0, %v787
      %v789 = vpop.f32.mrb[0].mxu0
      %790 = vmatprep.mubr.bf16.mxu0 0
      %791 = vmatmul.mubr.bf16.gmra.mrb[0].mxu0 %v564
      %v792 = vpop.f32.mrb[0].mxu0
      %v793 = vadd.f32 0.0, %v792
      %v794 = vpop.f32.mrb[0].mxu0
      %v795 = vpop.f32.mrb[0].mxu0
      %v796 = vadd.f32 0.0, %v795
      %v797 = vpop.f32.mrb[0].mxu0
      %798 = vmatprep.mubr.bf16.mxu0 0
      %799 = vmatmul.mubr.bf16.gmra.mrb[0].mxu0 %v567
      %v800 = vpop.f32.mrb[0].mxu0
      %v801 = vadd.f32 0.0, %v800
      %v802 = vpop.f32.mrb[0].mxu0
      %v803 = vpop.f32.mrb[0].mxu0
      %v804 = vadd.f32 0.0, %v803
      %v805 = vpop.f32.mrb[0].mxu0
      %806 = vmatprep.mubr.bf16.mxu0 0
      %807 = vmatmul.mubr.bf16.gmra.mrb[0].mxu0 %v570
      %v808 = vpop.f32.mrb[0].mxu0
      %v809 = vadd.f32 0.0, %v808
      %v810 = vpop.f32.mrb[0].mxu0
      %v811 = vpop.f32.mrb[0].mxu0
      %v812 = vadd.f32 0.0, %v811
      %v813 = vpop.f32.mrb[0].mxu0
      %814 = vmatprep.mubr.bf16.mxu0 0
      %815 = vmatmul.mubr.bf16.gmra.mrb[0].mxu0 %v573
      %v816 = vpop.f32.mrb[0].mxu0
      %v817 = vadd.f32 0.0, %v816
      %v818 = vpop.f32.mrb[0].mxu0
      %v819 = vpop.f32.mrb[0].mxu0
      %v820 = vadd.f32 0.0, %v819
      %v821 = vpop.f32.mrb[0].mxu0
      %822 = vmatprep.mubr.bf16.mxu0 0
      %823 = vmatmul.mubr.bf16.gmra.mrb[0].mxu0 %v576
      %v824 = vpop.f32.mrb[0].mxu0
      %v825 = vadd.f32 0.0, %v824
      %v826 = vpop.f32.mrb[0].mxu0
      %v827 = vpop.f32.mrb[0].mxu0
      %v828 = vadd.f32 0.0, %v827
      %v829 = vpop.f32.mrb[0].mxu0
      %830 = vmatprep.mubr.bf16.mxu0 0
      %831 = vmatmul.mubr.bf16.gmra.mrb[0].mxu0 %v579
      %v832 = vpop.f32.mrb[0].mxu0
      %v833 = vadd.f32 0.0, %v832
      %v834 = vpop.f32.mrb[0].mxu0
      %v835 = vpop.f32.mrb[0].mxu0
      %v836 = vadd.f32 0.0, %v835
      %v837 = vpop.f32.mrb[0].mxu0
      %838 = vmatprep.mubr.bf16.mxu0 0
      %839 = vmatmul.mubr.bf16.gmra.mrb[0].mxu0 %v582
      %v840 = vpop.f32.mrb[0].mxu0
      %v841 = vadd.f32 0.0, %v840
      %v842 = vpop.f32.mrb[0].mxu0
      %v843 = vpop.f32.mrb[0].mxu0
      %v844 = vadd.f32 0.0, %v843
      %v845 = vpop.f32.mrb[0].mxu0
      %846 = vmatprep.mubr.bf16.mxu0 0
      %847 = vmatmul.mubr.bf16.gmra.mrb[0].mxu0 %v585
      %v848 = vpop.f32.mrb[0].mxu0
      %v849 = vadd.f32 0.0, %v848
      %v850 = vpop.f32.mrb[0].mxu0
      %v851 = vpop.f32.mrb[0].mxu0
      %v852 = vadd.f32 0.0, %v851
      %v853 = vpop.f32.mrb[0].mxu0
      %854 = vmatprep.mubr.bf16.mxu0 0
      %855 = vmatmul.mubr.bf16.gmra.mrb[0].mxu0 %v588
      %v856 = vpop.f32.mrb[0].mxu0
      %v857 = vadd.f32 0.0, %v856
      %v858 = vpop.f32.mrb[0].mxu0
      %v859 = vpop.f32.mrb[0].mxu0
      %v860 = vadd.f32 0.0, %v859
      %v861 = vpop.f32.mrb[0].mxu0
      %862 = vmatprep.mubr.bf16.mxu0 0
      %863 = vmatmul.mubr.bf16.gmra.mrb[0].mxu0 %v591
      %v864 = vpop.f32.mrb[0].mxu0
      %v865 = vadd.f32 0.0, %v864
      %v866 = vpop.f32.mrb[0].mxu0
      %v867 = vpop.f32.mrb[0].mxu0
      %v868 = vadd.f32 0.0, %v867
      %v869 = vpop.f32.mrb[0].mxu0
      %870 = vmatprep.mubr.bf16.mxu0 0
      %871 = vmatmul.mubr.bf16.gmra.mrb[0].mxu0 %v594
      %v872 = vpop.f32.mrb[0].mxu0
      %v873 = vadd.f32 0.0, %v872
      %v874 = vpop.f32.mrb[0].mxu0
      %v875 = vpop.f32.mrb[0].mxu0
      %v876 = vadd.f32 0.0, %v875
      %v877 = vpop.f32.mrb[0].mxu0
      %878 = vmatprep.mubr.bf16.mxu0 0
      %879 = vmatmul.mubr.bf16.gmra.mrb[0].mxu0 %v597
      %v880 = vpop.f32.mrb[0].mxu0
      %v881 = vadd.f32 0.0, %v880
      %v882 = vpop.f32.mrb[0].mxu0
      %v883 = vpop.f32.mrb[0].mxu0
      %v884 = vadd.f32 0.0, %v883
      %v885 = vpop.f32.mrb[0].mxu0
      %886 = vmatprep.mubr.bf16.mxu0 0
      %887 = vmatmul.mubr.bf16.gmra.mrb[0].mxu0 %v600
      %v888 = vpop.f32.mrb[0].mxu0
      %v889 = vadd.f32 0.0, %v888
      %v890 = vpop.f32.mrb[0].mxu0
      %v891 = vpop.f32.mrb[0].mxu0
      %v892 = vadd.f32 0.0, %v891
      %v893 = vpop.f32.mrb[0].mxu0
      %894 = vdwg.mxu0
      // Predicated region
      $region75: #{conv2d_bn_relu.1} parent=31 // pred_check
        %p895 = pneg %p193
      $region76: #{conv2d_bn_relu.1} parent=31 // pred_check_branch
        %897 = sbr.rel (%p895) target = $region78
      $region77: #{conv2d_bn_relu.1} parent=31 // pred_region
        %v898 = vld [vmem:[#allocation3] sm:$0x1]
        %v899 = vadd.f32 %v641, %v644
        %v900 = vadd.f32 %v899, %v649
        %v901 = vadd.f32 %v900, %v652
        %v902 = vadd.f32 %v901, %v657
        %v903 = vadd.f32 %v902, %v660
        %v904 = vadd.f32 %v903, %v665
        %v905 = vadd.f32 %v904, %v668
        %v906 = vadd.f32 %v905, %v673
        %v907 = vadd.f32 %v906, %v676
        %v908 = vadd.f32 %v907, %v681
        %v909 = vadd.f32 %v908, %v684
        %v910 = vadd.f32 %v909, %v689
        %v911 = vadd.f32 %v910, %v692
        %v912 = vadd.f32 %v911, %v697
        %v913 = vadd.f32 %v912, %v700
        %v914 = vadd.f32 %v913, %v705
        %v915 = vadd.f32 %v914, %v708
        %v916 = vadd.f32 %v915, %v713
        %v917 = vadd.f32 %v916, %v716
        %v918 = vadd.f32 %v917, %v721
        %v919 = vadd.f32 %v918, %v724
        %v920 = vadd.f32 %v919, %v729
        %v921 = vadd.f32 %v920, %v732
        %v922 = vadd.f32 %v921, %v737
        %v923 = vadd.f32 %v922, %v740
        %v924 = vadd.f32 %v923, %v745
        %v925 = vadd.f32 %v924, %v748
        %v926 = vadd.f32 %v925, %v753
        %v927 = vadd.f32 %v926, %v756
        %v928 = vadd.f32 %v927, %v761
        %v929 = vadd.f32 %v928, %v764
        %v930 = vadd.f32 %v929, %v769
        %v931 = vadd.f32 %v930, %v772
        %v932 = vadd.f32 %v931, %v777
        %v933 = vadd.f32 %v932, %v780
        %v934 = vadd.f32 %v933, %v785
        %v935 = vadd.f32 %v934, %v788
        %v936 = vadd.f32 %v935, %v793
        %v937 = vadd.f32 %v936, %v796
        %v938 = vadd.f32 %v937, %v801
        %v939 = vadd.f32 %v938, %v804
        %v940 = vadd.f32 %v939, %v809
        %v941 = vadd.f32 %v940, %v812
        %v942 = vadd.f32 %v941, %v817
        %v943 = vadd.f32 %v942, %v820
        %v944 = vadd.f32 %v943, %v825
        %v945 = vadd.f32 %v944, %v828
        %v946 = vadd.f32 %v945, %v833
        %v947 = vadd.f32 %v946, %v836
        %v948 = vadd.f32 %v947, %v841
        %v949 = vadd.f32 %v948, %v844
        %v950 = vadd.f32 %v949, %v849
        %v951 = vadd.f32 %v950, %v852
        %v952 = vadd.f32 %v951, %v857
        %v953 = vadd.f32 %v952, %v860
        %v954 = vadd.f32 %v953, %v865
        %v955 = vadd.f32 %v954, %v868
        %v956 = vadd.f32 %v955, %v873
        %v957 = vadd.f32 %v956, %v876
        %v958 = vadd.f32 %v957, %v881
        %v959 = vadd.f32 %v958, %v884
        %v960 = vadd.f32 %v959, %v889
        %v961 = vadd.f32 %v960, %v892
        %v962 = vrot.slane %v961, 4
        %v963 = vadd.f32 %v961, %v962
        %v964 = vrot.slane %v963, 2
        %v965 = vadd.f32 %v963, %v964
        %v966 = vrot.slane %v965, 1
        %v967 = vadd.f32 %v965, %v966
        %v968 = vadd.f32 %v898, %v967
        %969 = vst [vmem:[#allocation3] sm:$0x1] %v968
        %v970 = vld [vmem:[#allocation4] sm:$0x1]
        %v971 = vmul.f32 %v641, %v641
        %v972 = vmul.f32 %v644, %v644
        %v973 = vmul.f32 %v649, %v649
        %v974 = vmul.f32 %v652, %v652
        %v975 = vmul.f32 %v657, %v657
        %v976 = vmul.f32 %v660, %v660
        %v977 = vmul.f32 %v665, %v665
        %v978 = vmul.f32 %v668, %v668
        %v979 = vmul.f32 %v673, %v673
        %v980 = vmul.f32 %v676, %v676
        %v981 = vmul.f32 %v681, %v681
        %v982 = vmul.f32 %v684, %v684
        %v983 = vmul.f32 %v689, %v689
        %v984 = vmul.f32 %v692, %v692
        %v985 = vmul.f32 %v697, %v697
        %v986 = vmul.f32 %v700, %v700
        %v987 = vmul.f32 %v705, %v705
        %v988 = vmul.f32 %v708, %v708
        %v989 = vmul.f32 %v713, %v713
        %v990 = vmul.f32 %v716, %v716
        %v991 = vmul.f32 %v721, %v721
        %v992 = vmul.f32 %v724, %v724
        %v993 = vmul.f32 %v729, %v729
        %v994 = vmul.f32 %v732, %v732
        %v995 = vmul.f32 %v737, %v737
        %v996 = vmul.f32 %v740, %v740
        %v997 = vmul.f32 %v745, %v745
        %v998 = vmul.f32 %v748, %v748
        %v999 = vmul.f32 %v753, %v753
        %v1000 = vmul.f32 %v756, %v756
        %v1001 = vmul.f32 %v761, %v761
        %v1002 = vmul.f32 %v764, %v764
        %v1003 = vmul.f32 %v769, %v769
        %v1004 = vmul.f32 %v772, %v772
        %v1005 = vmul.f32 %v777, %v777
        %v1006 = vmul.f32 %v780, %v780
        %v1007 = vmul.f32 %v785, %v785
        %v1008 = vmul.f32 %v788, %v788
        %v1009 = vmul.f32 %v793, %v793
        %v1010 = vmul.f32 %v796, %v796
        %v1011 = vmul.f32 %v801, %v801
        %v1012 = vmul.f32 %v804, %v804
        %v1013 = vmul.f32 %v809, %v809
        %v1014 = vmul.f32 %v812, %v812
        %v1015 = vmul.f32 %v817, %v817
        %v1016 = vmul.f32 %v820, %v820
        %v1017 = vmul.f32 %v825, %v825
        %v1018 = vmul.f32 %v828, %v828
        %v1019 = vmul.f32 %v833, %v833
        %v1020 = vmul.f32 %v836, %v836
        %v1021 = vmul.f32 %v841, %v841
        %v1022 = vmul.f32 %v844, %v844
        %v1023 = vmul.f32 %v849, %v849
        %v1024 = vmul.f32 %v852, %v852
        %v1025 = vmul.f32 %v857, %v857
        %v1026 = vmul.f32 %v860, %v860
        %v1027 = vmul.f32 %v865, %v865
        %v1028 = vmul.f32 %v868, %v868
        %v1029 = vmul.f32 %v873, %v873
        %v1030 = vmul.f32 %v876, %v876
        %v1031 = vmul.f32 %v881, %v881
        %v1032 = vmul.f32 %v884, %v884
        %v1033 = vmul.f32 %v889, %v889
        %v1034 = vmul.f32 %v892, %v892
        %v1035 = vadd.f32 %v971, %v972
        %v1036 = vadd.f32 %v1035, %v973
        %v1037 = vadd.f32 %v1036, %v974
        %v1038 = vadd.f32 %v1037, %v975
        %v1039 = vadd.f32 %v1038, %v976
        %v1040 = vadd.f32 %v1039, %v977
        %v1041 = vadd.f32 %v1040, %v978
        %v1042 = vadd.f32 %v1041, %v979
        %v1043 = vadd.f32 %v1042, %v980
        %v1044 = vadd.f32 %v1043, %v981
        %v1045 = vadd.f32 %v1044, %v982
        %v1046 = vadd.f32 %v1045, %v983
        %v1047 = vadd.f32 %v1046, %v984
        %v1048 = vadd.f32 %v1047, %v985
        %v1049 = vadd.f32 %v1048, %v986
        %v1050 = vadd.f32 %v1049, %v987
        %v1051 = vadd.f32 %v1050, %v988
        %v1052 = vadd.f32 %v1051, %v989
        %v1053 = vadd.f32 %v1052, %v990
        %v1054 = vadd.f32 %v1053, %v991
        %v1055 = vadd.f32 %v1054, %v992
        %v1056 = vadd.f32 %v1055, %v993
        %v1057 = vadd.f32 %v1056, %v994
        %v1058 = vadd.f32 %v1057, %v995
        %v1059 = vadd.f32 %v1058, %v996
        %v1060 = vadd.f32 %v1059, %v997
        %v1061 = vadd.f32 %v1060, %v998
        %v1062 = vadd.f32 %v1061, %v999
        %v1063 = vadd.f32 %v1062, %v1000
        %v1064 = vadd.f32 %v1063, %v1001
        %v1065 = vadd.f32 %v1064, %v1002
        %v1066 = vadd.f32 %v1065, %v1003
        %v1067 = vadd.f32 %v1066, %v1004
        %v1068 = vadd.f32 %v1067, %v1005
        %v1069 = vadd.f32 %v1068, %v1006
        %v1070 = vadd.f32 %v1069, %v1007
        %v1071 = vadd.f32 %v1070, %v1008
        %v1072 = vadd.f32 %v1071, %v1009
        %v1073 = vadd.f32 %v1072, %v1010
        %v1074 = vadd.f32 %v1073, %v1011
        %v1075 = vadd.f32 %v1074, %v1012
        %v1076 = vadd.f32 %v1075, %v1013
        %v1077 = vadd.f32 %v1076, %v1014
        %v1078 = vadd.f32 %v1077, %v1015
        %v1079 = vadd.f32 %v1078, %v1016
        %v1080 = vadd.f32 %v1079, %v1017
        %v1081 = vadd.f32 %v1080, %v1018
        %v1082 = vadd.f32 %v1081, %v1019
        %v1083 = vadd.f32 %v1082, %v1020
        %v1084 = vadd.f32 %v1083, %v1021
        %v1085 = vadd.f32 %v1084, %v1022
        %v1086 = vadd.f32 %v1085, %v1023
        %v1087 = vadd.f32 %v1086, %v1024
        %v1088 = vadd.f32 %v1087, %v1025
        %v1089 = vadd.f32 %v1088, %v1026
        %v1090 = vadd.f32 %v1089, %v1027
        %v1091 = vadd.f32 %v1090, %v1028
        %v1092 = vadd.f32 %v1091, %v1029
        %v1093 = vadd.f32 %v1092, %v1030
        %v1094 = vadd.f32 %v1093, %v1031
        %v1095 = vadd.f32 %v1094, %v1032
        %v1096 = vadd.f32 %v1095, %v1033
        %v1097 = vadd.f32 %v1096, %v1034
        %v1098 = vrot.slane %v1097, 4
        %v1099 = vadd.f32 %v1097, %v1098
        %v1100 = vrot.slane %v1099, 2
        %v1101 = vadd.f32 %v1099, %v1100
        %v1102 = vrot.slane %v1101, 1
        %v1103 = vadd.f32 %v1101, %v1102
        %v1104 = vadd.f32 %v970, %v1103
        %1105 = vst [vmem:[#allocation4] sm:$0x1] %v1104
      $region78: #{conv2d_bn_relu.1} parent=31 // pred_fallthru
        _
      %p1106 = scmp.eq.s32.totalorder %s19, 1
      %p1107 = pnand %p1106, %p194
      %p1108 = pneg %p1107
      // Predicated region
      $region79: #{conv2d_bn_relu.1} parent=31 // pred_check
        _
      $region80: #{conv2d_bn_relu.1} parent=31 // pred_check_branch
        %1110 = sbr.rel (%p1107) target = $region82
      $region81: #{conv2d_bn_relu.1} parent=31 // pred_region
        %v1111 = vld [vmem:[#allocation3] sm:$0x1]
        %v1112 = vmul.f32 %v1111, 0.001953125
        %v1113 = vld [vmem:[#allocation4] sm:$0x1]
        %v1114 = vmul.f32 %v1113, 0.001953125
        %v1115 = vmul.f32 %v1112, %v1112
        %v1116 = vsub.f32 %v1114, %v1115
        %v1117 = vmax.f32 %v1116, 0.0
        %v1118 = vadd.f32 %v1117, 1e-05
        %v1119 = vrsqrt.pop %v1118
        %v1120 = vld [vmem:[%s2] sm:$0x1]
        %v1121 = vmul.f32 %v1120, %v1119
        %1122 = vst [vmem:[#allocation5] sm:$0x1] %v1121
        %v1123 = vld [vmem:[%s3] sm:$0x1]
        %v1124 = vmul.f32 %v1112, %v1121
        %v1125 = vsub.f32 %v1123, %v1124
        %1126 = vst [vmem:[#allocation6] sm:$0x1] %v1125
      $region82: #{conv2d_bn_relu.1} parent=31 // pred_fallthru
        _
      // Predicated region
      $region83: #{conv2d_bn_relu.1} parent=31 // pred_check
        %p1127 = pneg %p1106
      $region84: #{conv2d_bn_relu.1} parent=31 // pred_check_branch
        %1129 = sbr.rel (%p1127) target = $region86
      $region85: #{conv2d_bn_relu.1} parent=31 // pred_region
        %v1130 = vld [vmem:[#allocation5] sm:$0x1]
        %v1132 = vlaneseq
        %v1133 = vshrl.u32 %v1132, 7
        %v1134 = vsub.s32 0, %v1133
        %v1135 = vrot.slane %v1130, %v1134
        %v1137 = vmul.f32 %v641, %v1135
        %v1138 = vmul.f32 %v644, %v1135
        %v1139 = vmul.f32 %v649, %v1135
        %v1140 = vmul.f32 %v652, %v1135
        %v1141 = vmul.f32 %v657, %v1135
        %v1142 = vmul.f32 %v660, %v1135
        %v1143 = vmul.f32 %v665, %v1135
        %v1144 = vmul.f32 %v668, %v1135
        %v1145 = vmul.f32 %v673, %v1135
        %v1146 = vmul.f32 %v676, %v1135
        %v1147 = vmul.f32 %v681, %v1135
        %v1148 = vmul.f32 %v684, %v1135
        %v1149 = vmul.f32 %v689, %v1135
        %v1150 = vmul.f32 %v692, %v1135
        %v1151 = vmul.f32 %v697, %v1135
        %v1152 = vmul.f32 %v700, %v1135
        %v1153 = vmul.f32 %v705, %v1135
        %v1154 = vmul.f32 %v708, %v1135
        %v1155 = vmul.f32 %v713, %v1135
        %v1156 = vmul.f32 %v716, %v1135
        %v1157 = vmul.f32 %v721, %v1135
        %v1158 = vmul.f32 %v724, %v1135
        %v1159 = vmul.f32 %v729, %v1135
        %v1160 = vmul.f32 %v732, %v1135
        %v1161 = vmul.f32 %v737, %v1135
        %v1162 = vmul.f32 %v740, %v1135
        %v1163 = vmul.f32 %v745, %v1135
        %v1164 = vmul.f32 %v748, %v1135
        %v1165 = vmul.f32 %v753, %v1135
        %v1166 = vmul.f32 %v756, %v1135
        %v1167 = vmul.f32 %v761, %v1135
        %v1168 = vmul.f32 %v764, %v1135
        %v1169 = vmul.f32 %v769, %v1135
        %v1170 = vmul.f32 %v772, %v1135
        %v1171 = vmul.f32 %v777, %v1135
        %v1172 = vmul.f32 %v780, %v1135
        %v1173 = vmul.f32 %v785, %v1135
        %v1174 = vmul.f32 %v788, %v1135
        %v1175 = vmul.f32 %v793, %v1135
        %v1176 = vmul.f32 %v796, %v1135
        %v1177 = vmul.f32 %v801, %v1135
        %v1178 = vmul.f32 %v804, %v1135
        %v1179 = vmul.f32 %v809, %v1135
        %v1180 = vmul.f32 %v812, %v1135
        %v1181 = vmul.f32 %v817, %v1135
        %v1182 = vmul.f32 %v820, %v1135
        %v1183 = vmul.f32 %v825, %v1135
        %v1184 = vmul.f32 %v828, %v1135
        %v1185 = vmul.f32 %v833, %v1135
        %v1186 = vmul.f32 %v836, %v1135
        %v1187 = vmul.f32 %v841, %v1135
        %v1188 = vmul.f32 %v844, %v1135
        %v1189 = vmul.f32 %v849, %v1135
        %v1190 = vmul.f32 %v852, %v1135
        %v1191 = vmul.f32 %v857, %v1135
        %v1192 = vmul.f32 %v860, %v1135
        %v1193 = vmul.f32 %v865, %v1135
        %v1194 = vmul.f32 %v868, %v1135
        %v1195 = vmul.f32 %v873, %v1135
        %v1196 = vmul.f32 %v876, %v1135
        %v1197 = vmul.f32 %v881, %v1135
        %v1198 = vmul.f32 %v884, %v1135
        %v1199 = vmul.f32 %v889, %v1135
        %v1200 = vmul.f32 %v892, %v1135
        %v1201 = vld [vmem:[#allocation6] sm:$0x1]
        %v1203 = vlaneseq
        %v1204 = vshrl.u32 %v1203, 7
        %v1205 = vsub.s32 0, %v1204
        %v1206 = vrot.slane %v1201, %v1205
        %v1208 = vadd.f32 %v1137, %v1206
        %v1209 = vadd.f32 %v1138, %v1206
        %v1210 = vadd.f32 %v1139, %v1206
        %v1211 = vadd.f32 %v1140, %v1206
        %v1212 = vadd.f32 %v1141, %v1206
        %v1213 = vadd.f32 %v1142, %v1206
        %v1214 = vadd.f32 %v1143, %v1206
        %v1215 = vadd.f32 %v1144, %v1206
        %v1216 = vadd.f32 %v1145, %v1206
        %v1217 = vadd.f32 %v1146, %v1206
        %v1218 = vadd.f32 %v1147, %v1206
        %v1219 = vadd.f32 %v1148, %v1206
        %v1220 = vadd.f32 %v1149, %v1206
        %v1221 = vadd.f32 %v1150, %v1206
        %v1222 = vadd.f32 %v1151, %v1206
        %v1223 = vadd.f32 %v1152, %v1206
        %v1224 = vadd.f32 %v1153, %v1206
        %v1225 = vadd.f32 %v1154, %v1206
        %v1226 = vadd.f32 %v1155, %v1206
        %v1227 = vadd.f32 %v1156, %v1206
        %v1228 = vadd.f32 %v1157, %v1206
        %v1229 = vadd.f32 %v1158, %v1206
        %v1230 = vadd.f32 %v1159, %v1206
        %v1231 = vadd.f32 %v1160, %v1206
        %v1232 = vadd.f32 %v1161, %v1206
        %v1233 = vadd.f32 %v1162, %v1206
        %v1234 = vadd.f32 %v1163, %v1206
        %v1235 = vadd.f32 %v1164, %v1206
        %v1236 = vadd.f32 %v1165, %v1206
        %v1237 = vadd.f32 %v1166, %v1206
        %v1238 = vadd.f32 %v1167, %v1206
        %v1239 = vadd.f32 %v1168, %v1206
        %v1240 = vadd.f32 %v1169, %v1206
        %v1241 = vadd.f32 %v1170, %v1206
        %v1242 = vadd.f32 %v1171, %v1206
        %v1243 = vadd.f32 %v1172, %v1206
        %v1244 = vadd.f32 %v1173, %v1206
        %v1245 = vadd.f32 %v1174, %v1206
        %v1246 = vadd.f32 %v1175, %v1206
        %v1247 = vadd.f32 %v1176, %v1206
        %v1248 = vadd.f32 %v1177, %v1206
        %v1249 = vadd.f32 %v1178, %v1206
        %v1250 = vadd.f32 %v1179, %v1206
        %v1251 = vadd.f32 %v1180, %v1206
        %v1252 = vadd.f32 %v1181, %v1206
        %v1253 = vadd.f32 %v1182, %v1206
        %v1254 = vadd.f32 %v1183, %v1206
        %v1255 = vadd.f32 %v1184, %v1206
        %v1256 = vadd.f32 %v1185, %v1206
        %v1257 = vadd.f32 %v1186, %v1206
        %v1258 = vadd.f32 %v1187, %v1206
        %v1259 = vadd.f32 %v1188, %v1206
        %v1260 = vadd.f32 %v1189, %v1206
        %v1261 = vadd.f32 %v1190, %v1206
        %v1262 = vadd.f32 %v1191, %v1206
        %v1263 = vadd.f32 %v1192, %v1206
        %v1264 = vadd.f32 %v1193, %v1206
        %v1265 = vadd.f32 %v1194, %v1206
        %v1266 = vadd.f32 %v1195, %v1206
        %v1267 = vadd.f32 %v1196, %v1206
        %v1268 = vadd.f32 %v1197, %v1206
        %v1269 = vadd.f32 %v1198, %v1206
        %v1270 = vadd.f32 %v1199, %v1206
        %v1271 = vadd.f32 %v1200, %v1206
        %v1272 = vmax.f32 %v1208, 0.0
        %v1273 = vmax.f32 %v1209, 0.0
        %v1274 = vmax.f32 %v1210, 0.0
        %v1275 = vmax.f32 %v1211, 0.0
        %v1276 = vmax.f32 %v1212, 0.0
        %v1277 = vmax.f32 %v1213, 0.0
        %v1278 = vmax.f32 %v1214, 0.0
        %v1279 = vmax.f32 %v1215, 0.0
        %v1280 = vmax.f32 %v1216, 0.0
        %v1281 = vmax.f32 %v1217, 0.0
        %v1282 = vmax.f32 %v1218, 0.0
        %v1283 = vmax.f32 %v1219, 0.0
        %v1284 = vmax.f32 %v1220, 0.0
        %v1285 = vmax.f32 %v1221, 0.0
        %v1286 = vmax.f32 %v1222, 0.0
        %v1287 = vmax.f32 %v1223, 0.0
        %v1288 = vmax.f32 %v1224, 0.0
        %v1289 = vmax.f32 %v1225, 0.0
        %v1290 = vmax.f32 %v1226, 0.0
        %v1291 = vmax.f32 %v1227, 0.0
        %v1292 = vmax.f32 %v1228, 0.0
        %v1293 = vmax.f32 %v1229, 0.0
        %v1294 = vmax.f32 %v1230, 0.0
        %v1295 = vmax.f32 %v1231, 0.0
        %v1296 = vmax.f32 %v1232, 0.0
        %v1297 = vmax.f32 %v1233, 0.0
        %v1298 = vmax.f32 %v1234, 0.0
        %v1299 = vmax.f32 %v1235, 0.0
        %v1300 = vmax.f32 %v1236, 0.0
        %v1301 = vmax.f32 %v1237, 0.0
        %v1302 = vmax.f32 %v1238, 0.0
        %v1303 = vmax.f32 %v1239, 0.0
        %v1304 = vmax.f32 %v1240, 0.0
        %v1305 = vmax.f32 %v1241, 0.0
        %v1306 = vmax.f32 %v1242, 0.0
        %v1307 = vmax.f32 %v1243, 0.0
        %v1308 = vmax.f32 %v1244, 0.0
        %v1309 = vmax.f32 %v1245, 0.0
        %v1310 = vmax.f32 %v1246, 0.0
        %v1311 = vmax.f32 %v1247, 0.0
        %v1312 = vmax.f32 %v1248, 0.0
        %v1313 = vmax.f32 %v1249, 0.0
        %v1314 = vmax.f32 %v1250, 0.0
        %v1315 = vmax.f32 %v1251, 0.0
        %v1316 = vmax.f32 %v1252, 0.0
        %v1317 = vmax.f32 %v1253, 0.0
        %v1318 = vmax.f32 %v1254, 0.0
        %v1319 = vmax.f32 %v1255, 0.0
        %v1320 = vmax.f32 %v1256, 0.0
        %v1321 = vmax.f32 %v1257, 0.0
        %v1322 = vmax.f32 %v1258, 0.0
        %v1323 = vmax.f32 %v1259, 0.0
        %v1324 = vmax.f32 %v1260, 0.0
        %v1325 = vmax.f32 %v1261, 0.0
        %v1326 = vmax.f32 %v1262, 0.0
        %v1327 = vmax.f32 %v1263, 0.0
        %v1328 = vmax.f32 %v1264, 0.0
        %v1329 = vmax.f32 %v1265, 0.0
        %v1330 = vmax.f32 %v1266, 0.0
        %v1331 = vmax.f32 %v1267, 0.0
        %v1332 = vmax.f32 %v1268, 0.0
        %v1333 = vmax.f32 %v1269, 0.0
        %v1334 = vmax.f32 %v1270, 0.0
        %v1335 = vmax.f32 %v1271, 0.0
        %1336 = vst [vmem:[%s189] sm:$0xff] %v1272
        %1337 = vst [vmem:[%s189 + $0x8] sm:$0xff] %v1273
        %1338 = vst [vmem:[%s189 + $0x10] sm:$0xff] %v1274
        %1339 = vst [vmem:[%s189 + $0x18] sm:$0xff] %v1275
        %1340 = vst [vmem:[%s189 + $0x20] sm:$0xff] %v1276
        %1341 = vst [vmem:[%s189 + $0x28] sm:$0xff] %v1277
        %1342 = vst [vmem:[%s189 + $0x30] sm:$0xff] %v1278
        %1343 = vst [vmem:[%s189 + $0x38] sm:$0xff] %v1279
        %1344 = vst [vmem:[%s189 + $0x40] sm:$0xff] %v1280
        %1345 = vst [vmem:[%s189 + $0x48] sm:$0xff] %v1281
        %1346 = vst [vmem:[%s189 + $0x50] sm:$0xff] %v1282
        %1347 = vst [vmem:[%s189 + $0x58] sm:$0xff] %v1283
        %1348 = vst [vmem:[%s189 + $0x60] sm:$0xff] %v1284
        %1349 = vst [vmem:[%s189 + $0x68] sm:$0xff] %v1285
        %1350 = vst [vmem:[%s189 + $0x70] sm:$0xff] %v1286
        %1351 = vst [vmem:[%s189 + $0x78] sm:$0xff] %v1287
        %1352 = vst [vmem:[%s189 + $0x80] sm:$0xff] %v1288
        %1353 = vst [vmem:[%s189 + $0x88] sm:$0xff] %v1289
        %1354 = vst [vmem:[%s189 + $0x90] sm:$0xff] %v1290
        %1355 = vst [vmem:[%s189 + $0x98] sm:$0xff] %v1291
        %1356 = vst [vmem:[%s189 + $0xa0] sm:$0xff] %v1292
        %1357 = vst [vmem:[%s189 + $0xa8] sm:$0xff] %v1293
        %1358 = vst [vmem:[%s189 + $0xb0] sm:$0xff] %v1294
        %1359 = vst [vmem:[%s189 + $0xb8] sm:$0xff] %v1295
        %1360 = vst [vmem:[%s189 + $0xc0] sm:$0xff] %v1296
        %1361 = vst [vmem:[%s189 + $0xc8] sm:$0xff] %v1297
        %1362 = vst [vmem:[%s189 + $0xd0] sm:$0xff] %v1298
        %1363 = vst [vmem:[%s189 + $0xd8] sm:$0xff] %v1299
        %1364 = vst [vmem:[%s189 + $0xe0] sm:$0xff] %v1300
        %1365 = vst [vmem:[%s189 + $0xe8] sm:$0xff] %v1301
        %1366 = vst [vmem:[%s189 + $0xf0] sm:$0xff] %v1302
        %1367 = vst [vmem:[%s189 + $0xf8] sm:$0xff] %v1303
        %1368 = vst [vmem:[%s189 + $0x100] sm:$0xff] %v1304
        %1369 = vst [vmem:[%s189 + $0x108] sm:$0xff] %v1305
        %1370 = vst [vmem:[%s189 + $0x110] sm:$0xff] %v1306
        %1371 = vst [vmem:[%s189 + $0x118] sm:$0xff] %v1307
        %1372 = vst [vmem:[%s189 + $0x120] sm:$0xff] %v1308
        %1373 = vst [vmem:[%s189 + $0x128] sm:$0xff] %v1309
        %1374 = vst [vmem:[%s189 + $0x130] sm:$0xff] %v1310
        %1375 = vst [vmem:[%s189 + $0x138] sm:$0xff] %v1311
        %1376 = vst [vmem:[%s189 + $0x140] sm:$0xff] %v1312
        %1377 = vst [vmem:[%s189 + $0x148] sm:$0xff] %v1313
        %1378 = vst [vmem:[%s189 + $0x150] sm:$0xff] %v1314
        %1379 = vst [vmem:[%s189 + $0x158] sm:$0xff] %v1315
        %1380 = vst [vmem:[%s189 + $0x160] sm:$0xff] %v1316
        %1381 = vst [vmem:[%s189 + $0x168] sm:$0xff] %v1317
        %1382 = vst [vmem:[%s189 + $0x170] sm:$0xff] %v1318
        %1383 = vst [vmem:[%s189 + $0x178] sm:$0xff] %v1319
        %1384 = vst [vmem:[%s189 + $0x180] sm:$0xff] %v1320
        %1385 = vst [vmem:[%s189 + $0x188] sm:$0xff] %v1321
        %1386 = vst [vmem:[%s189 + $0x190] sm:$0xff] %v1322
        %1387 = vst [vmem:[%s189 + $0x198] sm:$0xff] %v1323
        %1388 = vst [vmem:[%s189 + $0x1a0] sm:$0xff] %v1324
        %1389 = vst [vmem:[%s189 + $0x1a8] sm:$0xff] %v1325
        %1390 = vst [vmem:[%s189 + $0x1b0] sm:$0xff] %v1326
        %1391 = vst [vmem:[%s189 + $0x1b8] sm:$0xff] %v1327
        %1392 = vst [vmem:[%s189 + $0x1c0] sm:$0xff] %v1328
        %1393 = vst [vmem:[%s189 + $0x1c8] sm:$0xff] %v1329
        %1394 = vst [vmem:[%s189 + $0x1d0] sm:$0xff] %v1330
        %1395 = vst [vmem:[%s189 + $0x1d8] sm:$0xff] %v1331
        %1396 = vst [vmem:[%s189 + $0x1e0] sm:$0xff] %v1332
        %1397 = vst [vmem:[%s189 + $0x1e8] sm:$0xff] %v1333
        %1398 = vst [vmem:[%s189 + $0x1f0] sm:$0xff] %v1334
        %1399 = vst [vmem:[%s189 + $0x1f8] sm:$0xff] %v1335
      $region86: #{conv2d_bn_relu.1} parent=31 // pred_fallthru
        _
      %s1400 = smul.u32 %s19, %s20
      %s1401 = smul.u32 64, %s1400
      %p1402 = scmp.lt.s32.totalorder %s1401, 63
      %s1403 = scalar_select %p1402, %s1401, 63
      %s1404 = smul.addr %s1403, 8
      %s1405 = scalar_lea.vmem %s4, %s1404
      // Predicated region
      $region87: #{conv2d_bn_relu.1} parent=31 // pred_check
        %p1406 = pneg %p115
      $region88: #{conv2d_bn_relu.1} parent=31 // pred_check_branch
        %1408 = sbr.rel (%p1406) target = $region90
      $region89: #{conv2d_bn_relu.1} parent=31 // pred_region
        %s1409 = smul.u32 %s19, %s20
        %s1410 = smul.u32 64, %s1409
      $region90: #{conv2d_bn_relu.1} parent=31 // pred_fallthru
        _
    $region32: #{conv2d_bn_relu.1} parent=5 // pred_fallthru
      _
    %p1411 = scmp.le.s32.totalorder 2, %s10
    // Predicated region
    $region91: #{conv2d_bn_relu.1} parent=5 // pred_check
      %p1412 = pneg %p1411
    $region92: #{conv2d_bn_relu.1} parent=5 // pred_check_branch
      %1414 = sbr.rel (%p1412) target = $region94
    $region93: #{conv2d_bn_relu.1} parent=5 // pred_region
      %s1415 = ssub.s32 %s10, 2
      // Predicated region
      $region95: #{conv2d_bn_relu.1} parent=93 // pred_check
        %p1416 = pneg %p121
      $region96: #{conv2d_bn_relu.1} parent=93 // pred_check_branch
        %1418 = sbr.rel (%p1416) target = $region98
      $region97: #{conv2d_bn_relu.1} parent=93 // pred_region
        %s1419 = smul.u32 %s21, %s22
        %s1420 = smul.u32 64, %s1419
        %p1421 = scmp.lt.s32.totalorder %s1420, 63
        %s1422 = scalar_select %p1421, %s1420, 63
        %s1423 = smul.addr %s1422, 8
        %s1424 = scalar_lea.vmem %s4, %s1423
      $region98: #{conv2d_bn_relu.1} parent=93 // pred_fallthru
        _
    $region94: #{conv2d_bn_relu.1} parent=5 // pred_fallthru
      _
  $region6: #{conv2d_bn_relu.1} parent=0 // loop_footer
    %s14 = sadd.s32 1, %s10
  $region7: #{conv2d_bn_relu.1} parent=0 // loop_footer_branch
    %9 = sbr.rel target = $region3
  $region8: #{conv2d_bn_relu.1} parent=0 // loop_exit
    _

</llo_original>
